<compile_context>
chip_gen: v7x
topology: tpu7x:2x2x1
jax: 0.10.0
libtpu: 0.0.40
codegen_flags: <defaults>
</compile_context>

<pallas_src>
import jax
import jax.numpy as jnp
from jax.experimental import pallas as pl
from jax.experimental.pallas import tpu as pltpu

# ----- small synthetic config (consistent with Mamba args) -----
B = 2                      # batch
D = 32                     # d_model
E = 2 * D                  # d_inner
N = 16                     # d_state
D_CONV = 4                 # conv kernel
DT_RANK = max(1, (D + 15) // 16)   # = 2
V = 128                    # vocab size
L = 2                      # num layers
EPS = 1e-5


def _silu(x):
    return x * (1.0 / (1.0 + jnp.exp(-x)))


def _softplus(x):
    # overflow-safe softplus
    return jnp.where(x > 20.0, x, jnp.log(1.0 + jnp.exp(jnp.minimum(x, 20.0))))


# --------------------------------------------------------------------------
# Single fused kernel: all residual Mamba blocks + final RMSNorm + lm_head,
# plus in-place recurrent-state update.  No grid (one invocation); everything
# (~100 KiB) lives in VMEM.
# --------------------------------------------------------------------------
def mamba_forward_kernel(
        x0_ref, norm_w_ref, w_in_x_ref, w_in_z_ref, conv_w_ref, conv_b_ref,
        conv_state_ref, w_x_dt_ref, w_x_b_ref, w_x_c_ref, w_dt_ref, b_dt_ref,
        a_log_ref, d_prm_ref, ssm_state_ref, w_out_ref, norm_f_w_ref,
        w_lm_ref,
        logits_ref, conv_state_out_ref, ssm_state_out_ref):
    bf16 = jnp.bfloat16
    x = x0_ref[...]                                       # (B, D) residual

    for l in range(L):                                    # L=2, fully unrolled
        # ---- RMSNorm ----
        var = jnp.mean(x * x, axis=-1, keepdims=True)
        xn = x * jax.lax.rsqrt(var + EPS) * norm_w_ref[l]          # (B, D)
        xn_b = xn.astype(bf16)

        # ---- in_proj (split into x / z halves, bf16 MXU) ----
        xp = jnp.dot(xn_b, w_in_x_ref[l], preferred_element_type=jnp.float32)
        z = jnp.dot(xn_b, w_in_z_ref[l], preferred_element_type=jnp.float32)

        # ---- depthwise conv1d, single decode step ----
        cw = conv_w_ref[l]                                 # (D_CONV, E)
        cs = conv_state_ref[l]                             # (B, D_CONV-1, E)
        y = xp * cw[D_CONV - 1:D_CONV] + conv_b_ref[l]     # (B, E)
        for k in range(D_CONV - 1):
            y = y + cs[:, k, :] * cw[k:k + 1]
        y = _silu(y)                                       # (B, E)

        # conv-state update: shift window, append current input
        for k in range(D_CONV - 2):
            conv_state_out_ref[l, :, k:k + 1, :] = cs[:, k + 1:k + 2, :]
        conv_state_out_ref[l, :, D_CONV - 2:D_CONV - 1, :] = xp[:, None, :]

        # ---- x_proj: three lane-aligned dots (dt | B | C) ----
        y_b = y.astype(bf16)
        dt_low = jnp.dot(y_b, w_x_dt_ref[l], preferred_element_type=jnp.float32)
        b_ssm = jnp.dot(y_b, w_x_b_ref[l], preferred_element_type=jnp.float32)
        c_ssm = jnp.dot(y_b, w_x_c_ref[l], preferred_element_type=jnp.float32)

        # ---- dt_proj + softplus ----
        delta = jnp.dot(dt_low.astype(bf16), w_dt_ref[l],
                        preferred_element_type=jnp.float32) + b_dt_ref[l]
        delta = _softplus(delta)                           # (B, E)

        # ---- selective SSM single step, E on lane axis: (B, N, E) ----
        a = -jnp.exp(a_log_ref[l])                         # (N, E)
        da = jnp.exp(delta[:, None, :] * a[None, :, :])    # (B, N, E)
        dbx = delta[:, None, :] * b_ssm[:, :, None] * y[:, None, :]
        h = ssm_state_ref[l] * da + dbx                    # (B, N, E)
        ssm_state_out_ref[l] = h
        y_ssm = jnp.sum(h * c_ssm[:, :, None], axis=1)     # (B, E)
        y_ssm = y_ssm + d_prm_ref[l] * y

        # ---- gate, out_proj, residual add ----
        out = y_ssm * _silu(z)
        res = jnp.dot(out.astype(bf16), w_out_ref[l],
                      preferred_element_type=jnp.float32)  # (B, D)
        x = x + res

    # ---- fused head: norm_f + lm_head ----
    var = jnp.mean(x * x, axis=-1, keepdims=True)
    xn = x * jax.lax.rsqrt(var + EPS) * norm_f_w_ref[...]
    logits_ref[...] = jnp.dot(xn.astype(bf16), w_lm_ref[...],
                              preferred_element_type=jnp.float32)


def mamba_forward_call(x0, p):
    out_shapes = (
        jax.ShapeDtypeStruct((B, V), jnp.float32),                    # logits
        jax.ShapeDtypeStruct((L, B, D_CONV - 1, E), jnp.float32),     # conv st
        jax.ShapeDtypeStruct((L, B, N, E), jnp.float32),              # ssm st
    )
    return pl.pallas_call(
        mamba_forward_kernel,
        out_shape=out_shapes,
        # conv_state (input 6) and ssm_state (input 14) are updated in place.
        input_output_aliases={6: 1, 14: 2},
    )(x0, p['norm_w'], p['w_in_x'], p['w_in_z'], p['conv_w'], p['conv_b'],
      p['conv_state'], p['w_x_dt'], p['w_x_b'], p['w_x_c'], p['w_dt'],
      p['b_dt'], p['a_log'], p['d_prm'], p['ssm_state'], p['w_out'],
      p['norm_f_w'], p['w_lm'])


@jax.jit
def mamba_tt_forward(ids, params):
    # Glue: embedding gather + squeeze(1), exactly as the torch reference.
    x0 = params['emb'][ids[:, 0]]                          # (B, D) f32
    logits, new_conv_state, new_ssm_state = mamba_forward_call(x0, params)
    return logits[:, None, :], new_conv_state, new_ssm_state   # (B,1,V), states


# --------------------------------------------------------------------------
# Deterministic parameter init (shapes implied by Mamba args / __init__).
# MXU weights stored bf16; elementwise params and recurrent state are f32.
# --------------------------------------------------------------------------
def init_params(key):
    ks = jax.random.split(key, 14)
    s = 0.05
    f32, bf16 = jnp.float32, jnp.bfloat16
    emb = s * jax.random.normal(ks[0], (V, D), f32)
    w_in = s * jax.random.normal(ks[2], (L, D, 2 * E), f32)
    w_x = s * jax.random.normal(ks[5], (L, E, DT_RANK + 2 * N), f32)
    params = dict(
        emb=emb,
        norm_w=1.0 + s * jax.random.normal(ks[1], (L, 1, D), f32),
        w_in_x=w_in[:, :, :E].astype(bf16),
        w_in_z=w_in[:, :, E:].astype(bf16),
        conv_w=s * jax.random.normal(ks[3], (L, D_CONV, E), f32),
        conv_b=s * jax.random.normal(ks[4], (L, 1, E), f32),
        conv_state=0.1 * jax.random.normal(ks[10], (L, B, D_CONV - 1, E), f32),
        w_x_dt=w_x[:, :, :DT_RANK].astype(bf16),
        w_x_b=w_x[:, :, DT_RANK:DT_RANK + N].astype(bf16),
        w_x_c=w_x[:, :, DT_RANK + N:].astype(bf16),
        w_dt=(s * jax.random.normal(ks[6], (L, DT_RANK, E), f32)).astype(bf16),
        b_dt=s * jax.random.normal(ks[7], (L, 1, E), f32),
        a_log=jnp.log(jnp.broadcast_to(
            jnp.arange(1, N + 1, dtype=f32)[:, None], (L, N, E))),
        d_prm=jnp.ones((L, 1, E), f32),
        ssm_state=0.1 * jax.random.normal(ks[11], (L, B, N, E), f32),
        w_out=(s * jax.random.normal(ks[8], (L, E, D), f32)).astype(bf16),
        norm_f_w=1.0 + s * jax.random.normal(ks[9], (1, D), f32),
        w_lm=emb.T.astype(bf16),                 # tied lm_head: (D, V)
    )
    return params


# Pure-JAX reference with identical math (same bf16 MXU inputs, same layouts,
# same state update), for validation.
def ref_forward(ids, p):
    bf16 = jnp.bfloat16
    x = p['emb'][ids[:, 0]]
    new_cs, new_ss = [], []
    for l in range(L):
        var = jnp.mean(x * x, axis=-1, keepdims=True)
        xn = x * jax.lax.rsqrt(var + EPS) * p['norm_w'][l]
        xn_b = xn.astype(bf16)
        xp = jnp.dot(xn_b, p['w_in_x'][l], preferred_element_type=jnp.float32)
        z = jnp.dot(xn_b, p['w_in_z'][l], preferred_element_type=jnp.float32)
        cw, cs = p['conv_w'][l], p['conv_state'][l]
        y = xp * cw[D_CONV - 1:D_CONV] + p['conv_b'][l]
        for k in range(D_CONV - 1):
            y = y + cs[:, k, :] * cw[k:k + 1]
        y = _silu(y)
        new_cs.append(jnp.concatenate([cs[:, 1:, :], xp[:, None, :]], axis=1))
        y_b = y.astype(bf16)
        dt_low = jnp.dot(y_b, p['w_x_dt'][l], preferred_element_type=jnp.float32)
        b_ssm = jnp.dot(y_b, p['w_x_b'][l], preferred_element_type=jnp.float32)
        c_ssm = jnp.dot(y_b, p['w_x_c'][l], preferred_element_type=jnp.float32)
        delta = _softplus(jnp.dot(dt_low.astype(bf16), p['w_dt'][l],
                                  preferred_element_type=jnp.float32)
                          + p['b_dt'][l])
        a = -jnp.exp(p['a_log'][l])
        da = jnp.exp(delta[:, None, :] * a[None, :, :])
        dbx = delta[:, None, :] * b_ssm[:, :, None] * y[:, None, :]
        h = p['ssm_state'][l] * da + dbx
        new_ss.append(h)
        y_ssm = jnp.sum(h * c_ssm[:, :, None], axis=1) + p['d_prm'][l] * y
        out = y_ssm * _silu(z)
        x = x + jnp.dot(out.astype(bf16), p['w_out'][l],
                        preferred_element_type=jnp.float32)
    var = jnp.mean(x * x, axis=-1, keepdims=True)
    xn = x * jax.lax.rsqrt(var + EPS) * p['norm_f_w']
    logits = jnp.dot(xn.astype(bf16), p['w_lm'],
                     preferred_element_type=jnp.float32)
    return logits[:, None, :], jnp.stack(new_cs), jnp.stack(new_ss)


if __name__ == "__main__":
    key = jax.random.PRNGKey(0)
    k_ids, k_par = jax.random.split(key)
    params = init_params(k_par)
    ids1 = jax.random.randint(k_ids, (B, 1), 0, V, dtype=jnp.int32)
    ids2 = (ids1 + 7) % V

    # two decode steps, threading the recurrent state produced by the kernel
    logits1, cs1, ss1 = mamba_tt_forward(ids1, params)
    params_step2 = dict(params, conv_state=cs1, ssm_state=ss1)
    logits2, cs2, ss2 = mamba_tt_forward(ids2, params_step2)
    jax.block_until_ready((logits1, cs1, ss1, logits2, cs2, ss2))

    r_logits1, r_cs1, r_ss1 = ref_forward(ids1, params)
    r_params_step2 = dict(params, conv_state=r_cs1, ssm_state=r_ss1)
    r_logits2, r_cs2, r_ss2 = ref_forward(ids2, r_params_step2)

    assert logits1.shape == (B, 1, V), logits1.shape
    for got, want in [(logits1, r_logits1), (cs1, r_cs1), (ss1, r_ss1),
                      (logits2, r_logits2), (cs2, r_cs2), (ss2, r_ss2)]:
        assert got.shape == want.shape, (got.shape, want.shape)
        assert jnp.allclose(got, want, rtol=1e-3, atol=1e-3), (
            float(jnp.max(jnp.abs(got - want))))
    print("KERNEL_OK")
</pallas_src>

<mosaic_0001>
module attributes {stable_mosaic.version = 11 : i64} {
  func.func @mamba_forward_kernel(%arg0: memref<2x32xf32, #tpu.memory_space<vmem>>, %arg1: memref<2x1x32xf32, #tpu.memory_space<vmem>>, %arg2: memref<2x32x64xbf16, #tpu.memory_space<vmem>>, %arg3: memref<2x32x64xbf16, #tpu.memory_space<vmem>>, %arg4: memref<2x4x64xf32, #tpu.memory_space<vmem>>, %arg5: memref<2x1x64xf32, #tpu.memory_space<vmem>>, %arg6: memref<2x2x3x64xf32, #tpu.memory_space<vmem>>, %arg7: memref<2x64x2xbf16, #tpu.memory_space<vmem>>, %arg8: memref<2x64x16xbf16, #tpu.memory_space<vmem>>, %arg9: memref<2x64x16xbf16, #tpu.memory_space<vmem>>, %arg10: memref<2x2x64xbf16, #tpu.memory_space<vmem>>, %arg11: memref<2x1x64xf32, #tpu.memory_space<vmem>>, %arg12: memref<2x16x64xf32, #tpu.memory_space<vmem>>, %arg13: memref<2x1x64xf32, #tpu.memory_space<vmem>>, %arg14: memref<2x2x16x64xf32, #tpu.memory_space<vmem>>, %arg15: memref<2x64x32xbf16, #tpu.memory_space<vmem>>, %arg16: memref<1x32xf32, #tpu.memory_space<vmem>>, %arg17: memref<32x128xbf16, #tpu.memory_space<vmem>>, %arg18: memref<2x128xf32, #tpu.memory_space<vmem>>, %arg19: memref<2x2x3x64xf32, #tpu.memory_space<vmem>>, %arg20: memref<2x2x16x64xf32, #tpu.memory_space<vmem>>) attributes {dimension_semantics = [], scalar_prefetch = 0 : i64, scratch_operands = 0 : i64, tpu.core_type = #tpu.core_type<tc>} {
    %c0 = arith.constant 0 : index
    %c0_0 = arith.constant 0 : index
    %0 = vector.load %arg0[%c0, %c0_0] : memref<2x32xf32, #tpu.memory_space<vmem>>, vector<2x32xf32>
    %1 = arith.mulf %0, %0 : vector<2x32xf32>
    %cst = arith.constant dense<0.000000e+00> : vector<2xf32>
    %2 = vector.multi_reduction <add>, %1, %cst [1] : vector<2x32xf32> to vector<2xf32>
    %3 = vector.shape_cast %2 : vector<2xf32> to vector<2x1xf32>
    %cst_1 = arith.constant 3.200000e+01 : f32
    %4 = vector.broadcast %cst_1 : f32 to vector<2x1xf32>
    %5 = arith.divf %3, %4 : vector<2x1xf32>
    %cst_2 = arith.constant 9.99999974E-6 : f32
    %6 = vector.broadcast %cst_2 : f32 to vector<2x1xf32>
    %7 = arith.addf %5, %6 : vector<2x1xf32>
    %8 = math.rsqrt %7 : vector<2x1xf32>
    %9 = vector.broadcast %8 : vector<2x1xf32> to vector<2x32xf32>
    %10 = arith.mulf %0, %9 : vector<2x32xf32>
    %c0_3 = arith.constant 0 : index
    %c0_4 = arith.constant 0 : index
    %c0_5 = arith.constant 0 : index
    %11 = vector.load %arg1[%c0_3, %c0_4, %c0_5] : memref<2x1x32xf32, #tpu.memory_space<vmem>>, vector<1x1x32xf32>
    %12 = vector.shape_cast %11 : vector<1x1x32xf32> to vector<1x32xf32>
    %13 = vector.broadcast %12 : vector<1x32xf32> to vector<2x32xf32>
    %14 = arith.mulf %10, %13 : vector<2x32xf32>
    %15 = arith.truncf %14 : vector<2x32xf32> to vector<2x32xbf16>
    %c0_6 = arith.constant 0 : index
    %c0_7 = arith.constant 0 : index
    %c0_8 = arith.constant 0 : index
    %16 = vector.load %arg2[%c0_6, %c0_7, %c0_8] : memref<2x32x64xbf16, #tpu.memory_space<vmem>>, vector<1x32x64xbf16>
    %17 = vector.shape_cast %16 : vector<1x32x64xbf16> to vector<32x64xbf16>
    %cst_9 = arith.constant dense<0.000000e+00> : vector<2x64xf32>
    %18 = tpu.matmul %15, %17, %cst_9 {dimension_numbers = #tpu.dot_dimension_numbers<[1], [0], [0], [1], [0, 0, 1, 1], [], []>} : vector<2x32xbf16>, vector<32x64xbf16>, vector<2x64xf32> -> vector<2x64xf32>
    %c0_10 = arith.constant 0 : index
    %c0_11 = arith.constant 0 : index
    %c0_12 = arith.constant 0 : index
    %19 = vector.load %arg3[%c0_10, %c0_11, %c0_12] : memref<2x32x64xbf16, #tpu.memory_space<vmem>>, vector<1x32x64xbf16>
    %20 = vector.shape_cast %19 : vector<1x32x64xbf16> to vector<32x64xbf16>
    %cst_13 = arith.constant dense<0.000000e+00> : vector<2x64xf32>
    %21 = tpu.matmul %15, %20, %cst_13 {dimension_numbers = #tpu.dot_dimension_numbers<[1], [0], [0], [1], [0, 0, 1, 1], [], []>} : vector<2x32xbf16>, vector<32x64xbf16>, vector<2x64xf32> -> vector<2x64xf32>
    %c0_14 = arith.constant 0 : index
    %c0_15 = arith.constant 0 : index
    %c0_16 = arith.constant 0 : index
    %22 = vector.load %arg4[%c0_14, %c0_15, %c0_16] : memref<2x4x64xf32, #tpu.memory_space<vmem>>, vector<1x4x64xf32>
    %23 = vector.shape_cast %22 : vector<1x4x64xf32> to vector<4x64xf32>
    %c0_17 = arith.constant 0 : index
    %c0_18 = arith.constant 0 : index
    %c0_19 = arith.constant 0 : index
    %c0_20 = arith.constant 0 : index
    %24 = vector.load %arg6[%c0_17, %c0_18, %c0_19, %c0_20] : memref<2x2x3x64xf32, #tpu.memory_space<vmem>>, vector<1x2x3x64xf32>
    %25 = vector.shape_cast %24 : vector<1x2x3x64xf32> to vector<2x3x64xf32>
    %26 = vector.extract_strided_slice %23 {offsets = [3, 0], sizes = [1, 64], strides = [1, 1]} : vector<4x64xf32> to vector<1x64xf32>
    %27 = vector.broadcast %26 : vector<1x64xf32> to vector<2x64xf32>
    %28 = arith.mulf %18, %27 : vector<2x64xf32>
    %c0_21 = arith.constant 0 : index
    %c0_22 = arith.constant 0 : index
    %c0_23 = arith.constant 0 : index
    %29 = vector.load %arg5[%c0_21, %c0_22, %c0_23] : memref<2x1x64xf32, #tpu.memory_space<vmem>>, vector<1x1x64xf32>
    %30 = vector.shape_cast %29 : vector<1x1x64xf32> to vector<1x64xf32>
    %31 = vector.broadcast %30 : vector<1x64xf32> to vector<2x64xf32>
    %32 = arith.addf %28, %31 : vector<2x64xf32>
    %33 = vector.extract_strided_slice %25 {offsets = [0, 0, 0], sizes = [2, 1, 64], strides = [1, 1, 1]} : vector<2x3x64xf32> to vector<2x1x64xf32>
    %34 = vector.shape_cast %33 : vector<2x1x64xf32> to vector<2x64xf32>
    %35 = vector.extract_strided_slice %23 {offsets = [0, 0], sizes = [1, 64], strides = [1, 1]} : vector<4x64xf32> to vector<1x64xf32>
    %36 = vector.broadcast %35 : vector<1x64xf32> to vector<2x64xf32>
    %37 = arith.mulf %34, %36 : vector<2x64xf32>
    %38 = arith.addf %32, %37 : vector<2x64xf32>
    %39 = vector.extract_strided_slice %25 {offsets = [0, 1, 0], sizes = [2, 1, 64], strides = [1, 1, 1]} : vector<2x3x64xf32> to vector<2x1x64xf32>
    %40 = vector.shape_cast %39 : vector<2x1x64xf32> to vector<2x64xf32>
    %41 = vector.extract_strided_slice %23 {offsets = [1, 0], sizes = [1, 64], strides = [1, 1]} : vector<4x64xf32> to vector<1x64xf32>
    %42 = vector.broadcast %41 : vector<1x64xf32> to vector<2x64xf32>
    %43 = arith.mulf %40, %42 : vector<2x64xf32>
    %44 = arith.addf %38, %43 : vector<2x64xf32>
    %45 = vector.extract_strided_slice %25 {offsets = [0, 2, 0], sizes = [2, 1, 64], strides = [1, 1, 1]} : vector<2x3x64xf32> to vector<2x1x64xf32>
    %46 = vector.shape_cast %45 : vector<2x1x64xf32> to vector<2x64xf32>
    %47 = vector.extract_strided_slice %23 {offsets = [2, 0], sizes = [1, 64], strides = [1, 1]} : vector<4x64xf32> to vector<1x64xf32>
    %48 = vector.broadcast %47 : vector<1x64xf32> to vector<2x64xf32>
    %49 = arith.mulf %46, %48 : vector<2x64xf32>
    %50 = arith.addf %44, %49 : vector<2x64xf32>
    %cst_24 = arith.constant 0.000000e+00 : f32
    %51 = vector.broadcast %cst_24 : f32 to vector<2x64xf32>
    %52 = arith.subf %51, %50 : vector<2x64xf32>
    %53 = math.exp %52 : vector<2x64xf32>
    %cst_25 = arith.constant 1.000000e+00 : f32
    %54 = vector.broadcast %cst_25 : f32 to vector<2x64xf32>
    %55 = arith.addf %54, %53 : vector<2x64xf32>
    %cst_26 = arith.constant 1.000000e+00 : f32
    %56 = vector.broadcast %cst_26 : f32 to vector<2x64xf32>
    %57 = arith.divf %56, %55 : vector<2x64xf32>
    %58 = arith.mulf %50, %57 : vector<2x64xf32>
    %59 = vector.extract_strided_slice %25 {offsets = [0, 1, 0], sizes = [2, 1, 64], strides = [1, 1, 1]} : vector<2x3x64xf32> to vector<2x1x64xf32>
    %c0_27 = arith.constant 0 : index
    %c0_28 = arith.constant 0 : index
    %c0_29 = arith.constant 0 : index
    %c0_30 = arith.constant 0 : index
    %60 = vector.load %arg19[%c0_27, %c0_28, %c0_29, %c0_30] : memref<2x2x3x64xf32, #tpu.memory_space<vmem>>, vector<1x2x1x64xf32>
    %61 = vector.shape_cast %60 : vector<1x2x1x64xf32> to vector<2x1x64xf32>
    %62 = vector.shape_cast %59 : vector<2x1x64xf32> to vector<1x2x1x64xf32>
    tpu.vector_store %arg19[%c0_27, %c0_28, %c0_29, %c0_30], %62 {strides = array<i32>} : memref<2x2x3x64xf32, #tpu.memory_space<vmem>>, vector<1x2x1x64xf32>,
    %63 = vector.extract_strided_slice %25 {offsets = [0, 2, 0], sizes = [2, 1, 64], strides = [1, 1, 1]} : vector<2x3x64xf32> to vector<2x1x64xf32>
    %c0_31 = arith.constant 0 : index
    %c0_32 = arith.constant 0 : index
    %c1 = arith.constant 1 : index
    %c0_33 = arith.constant 0 : index
    %64 = vector.load %arg19[%c0_31, %c0_32, %c1, %c0_33] : memref<2x2x3x64xf32, #tpu.memory_space<vmem>>, vector<1x2x1x64xf32>
    %65 = vector.shape_cast %64 : vector<1x2x1x64xf32> to vector<2x1x64xf32>
    %66 = vector.shape_cast %63 : vector<2x1x64xf32> to vector<1x2x1x64xf32>
    tpu.vector_store %arg19[%c0_31, %c0_32, %c1, %c0_33], %66 {strides = array<i32>} : memref<2x2x3x64xf32, #tpu.memory_space<vmem>>, vector<1x2x1x64xf32>,
    %67 = vector.shape_cast %18 : vector<2x64xf32> to vector<2x1x64xf32>
    %c0_34 = arith.constant 0 : index
    %c0_35 = arith.constant 0 : index
    %c2 = arith.constant 2 : index
    %c0_36 = arith.constant 0 : index
    %68 = vector.load %arg19[%c0_34, %c0_35, %c2, %c0_36] : memref<2x2x3x64xf32, #tpu.memory_space<vmem>>, vector<1x2x1x64xf32>
    %69 = vector.shape_cast %68 : vector<1x2x1x64xf32> to vector<2x1x64xf32>
    %70 = vector.shape_cast %67 : vector<2x1x64xf32> to vector<1x2x1x64xf32>
    tpu.vector_store %arg19[%c0_34, %c0_35, %c2, %c0_36], %70 {strides = array<i32>} : memref<2x2x3x64xf32, #tpu.memory_space<vmem>>, vector<1x2x1x64xf32>,
    %71 = arith.truncf %58 : vector<2x64xf32> to vector<2x64xbf16>
    %c0_37 = arith.constant 0 : index
    %c0_38 = arith.constant 0 : index
    %c0_39 = arith.constant 0 : index
    %72 = vector.load %arg7[%c0_37, %c0_38, %c0_39] : memref<2x64x2xbf16, #tpu.memory_space<vmem>>, vector<1x64x2xbf16>
    %73 = vector.shape_cast %72 : vector<1x64x2xbf16> to vector<64x2xbf16>
    %cst_40 = arith.constant dense<0.000000e+00> : vector<2x2xf32>
    %74 = tpu.matmul %71, %73, %cst_40 {dimension_numbers = #tpu.dot_dimension_numbers<[1], [0], [0], [1], [0, 0, 1, 1], [], []>} : vector<2x64xbf16>, vector<64x2xbf16>, vector<2x2xf32> -> vector<2x2xf32>
    %c0_41 = arith.constant 0 : index
    %c0_42 = arith.constant 0 : index
    %c0_43 = arith.constant 0 : index
    %75 = vector.load %arg8[%c0_41, %c0_42, %c0_43] : memref<2x64x16xbf16, #tpu.memory_space<vmem>>, vector<1x64x16xbf16>
    %76 = vector.shape_cast %75 : vector<1x64x16xbf16> to vector<64x16xbf16>
    %cst_44 = arith.constant dense<0.000000e+00> : vector<2x16xf32>
    %77 = tpu.matmul %71, %76, %cst_44 {dimension_numbers = #tpu.dot_dimension_numbers<[1], [0], [0], [1], [0, 0, 1, 1], [], []>} : vector<2x64xbf16>, vector<64x16xbf16>, vector<2x16xf32> -> vector<2x16xf32>
    %c0_45 = arith.constant 0 : index
    %c0_46 = arith.constant 0 : index
    %c0_47 = arith.constant 0 : index
    %78 = vector.load %arg9[%c0_45, %c0_46, %c0_47] : memref<2x64x16xbf16, #tpu.memory_space<vmem>>, vector<1x64x16xbf16>
    %79 = vector.shape_cast %78 : vector<1x64x16xbf16> to vector<64x16xbf16>
    %cst_48 = arith.constant dense<0.000000e+00> : vector<2x16xf32>
    %80 = tpu.matmul %71, %79, %cst_48 {dimension_numbers = #tpu.dot_dimension_numbers<[1], [0], [0], [1], [0, 0, 1, 1], [], []>} : vector<2x64xbf16>, vector<64x16xbf16>, vector<2x16xf32> -> vector<2x16xf32>
    %81 = arith.truncf %74 : vector<2x2xf32> to vector<2x2xbf16>
    %c0_49 = arith.constant 0 : index
    %c0_50 = arith.constant 0 : index
    %c0_51 = arith.constant 0 : index
    %82 = vector.load %arg10[%c0_49, %c0_50, %c0_51] : memref<2x2x64xbf16, #tpu.memory_space<vmem>>, vector<1x2x64xbf16>
    %83 = vector.shape_cast %82 : vector<1x2x64xbf16> to vector<2x64xbf16>
    %cst_52 = arith.constant dense<0.000000e+00> : vector<2x64xf32>
    %84 = tpu.matmul %81, %83, %cst_52 {dimension_numbers = #tpu.dot_dimension_numbers<[1], [0], [0], [1], [0, 0, 1, 1], [], []>} : vector<2x2xbf16>, vector<2x64xbf16>, vector<2x64xf32> -> vector<2x64xf32>
    %c0_53 = arith.constant 0 : index
    %c0_54 = arith.constant 0 : index
    %c0_55 = arith.constant 0 : index
    %85 = vector.load %arg11[%c0_53, %c0_54, %c0_55] : memref<2x1x64xf32, #tpu.memory_space<vmem>>, vector<1x1x64xf32>
    %86 = vector.shape_cast %85 : vector<1x1x64xf32> to vector<1x64xf32>
    %87 = vector.broadcast %86 : vector<1x64xf32> to vector<2x64xf32>
    %88 = arith.addf %84, %87 : vector<2x64xf32>
    %cst_56 = arith.constant 2.000000e+01 : f32
    %89 = vector.broadcast %cst_56 : f32 to vector<2x64xf32>
    %90 = arith.cmpf ogt, %88, %89 : vector<2x64xf32>
    %cst_57 = arith.constant 2.000000e+01 : f32
    %91 = vector.broadcast %cst_57 : f32 to vector<2x64xf32>
    %92 = arith.minimumf %88, %91 : vector<2x64xf32>
    %93 = math.exp %92 : vector<2x64xf32>
    %cst_58 = arith.constant 1.000000e+00 : f32
    %94 = vector.broadcast %cst_58 : f32 to vector<2x64xf32>
    %95 = arith.addf %94, %93 : vector<2x64xf32>
    %96 = math.log %95 : vector<2x64xf32>
    %97 = arith.select %90, %88, %96 : vector<2x64xi1>, vector<2x64xf32>
    %c0_59 = arith.constant 0 : index
    %c0_60 = arith.constant 0 : index
    %c0_61 = arith.constant 0 : index
    %98 = vector.load %arg12[%c0_59, %c0_60, %c0_61] : memref<2x16x64xf32, #tpu.memory_space<vmem>>, vector<1x16x64xf32>
    %99 = vector.shape_cast %98 : vector<1x16x64xf32> to vector<16x64xf32>
    %100 = math.exp %99 : vector<16x64xf32>
    %cst_62 = arith.constant 0.000000e+00 : f32
    %101 = vector.broadcast %cst_62 : f32 to vector<16x64xf32>
    %102 = arith.subf %101, %100 : vector<16x64xf32>
    %103 = vector.shape_cast %97 : vector<2x64xf32> to vector<2x1x64xf32>
    %104 = vector.shape_cast %102 : vector<16x64xf32> to vector<1x16x64xf32>
    %105 = vector.broadcast %103 : vector<2x1x64xf32> to vector<2x16x64xf32>
    %106 = vector.broadcast %104 : vector<1x16x64xf32> to vector<2x16x64xf32>
    %107 = arith.mulf %105, %106 : vector<2x16x64xf32>
    %108 = math.exp %107 : vector<2x16x64xf32>
    %109 = vector.shape_cast %97 : vector<2x64xf32> to vector<2x1x64xf32>
    %110 = vector.shape_cast %77 : vector<2x16xf32> to vector<2x16x1xf32>
    %111 = vector.broadcast %109 : vector<2x1x64xf32> to vector<2x16x64xf32>
    %112 = vector.broadcast %110 : vector<2x16x1xf32> to vector<2x16x64xf32>
    %113 = arith.mulf %111, %112 : vector<2x16x64xf32>
    %114 = vector.shape_cast %58 : vector<2x64xf32> to vector<2x1x64xf32>
    %115 = vector.broadcast %114 : vector<2x1x64xf32> to vector<2x16x64xf32>
    %116 = arith.mulf %113, %115 : vector<2x16x64xf32>
    %c0_63 = arith.constant 0 : index
    %c0_64 = arith.constant 0 : index
    %c0_65 = arith.constant 0 : index
    %c0_66 = arith.constant 0 : index
    %117 = vector.load %arg14[%c0_63, %c0_64, %c0_65, %c0_66] : memref<2x2x16x64xf32, #tpu.memory_space<vmem>>, vector<1x2x16x64xf32>
    %118 = vector.shape_cast %117 : vector<1x2x16x64xf32> to vector<2x16x64xf32>
    %119 = arith.mulf %118, %108 : vector<2x16x64xf32>
    %120 = arith.addf %119, %116 : vector<2x16x64xf32>
    %c0_67 = arith.constant 0 : index
    %c0_68 = arith.constant 0 : index
    %c0_69 = arith.constant 0 : index
    %c0_70 = arith.constant 0 : index
    %121 = vector.load %arg20[%c0_67, %c0_68, %c0_69, %c0_70] : memref<2x2x16x64xf32, #tpu.memory_space<vmem>>, vector<1x2x16x64xf32>
    %122 = vector.shape_cast %121 : vector<1x2x16x64xf32> to vector<2x16x64xf32>
    %123 = vector.shape_cast %120 : vector<2x16x64xf32> to vector<1x2x16x64xf32>
    tpu.vector_store %arg20[%c0_67, %c0_68, %c0_69, %c0_70], %123 {strides = array<i32>} : memref<2x2x16x64xf32, #tpu.memory_space<vmem>>, vector<1x2x16x64xf32>,
    %124 = vector.shape_cast %80 : vector<2x16xf32> to vector<2x16x1xf32>
    %125 = vector.broadcast %124 : vector<2x16x1xf32> to vector<2x16x64xf32>
    %126 = arith.mulf %120, %125 : vector<2x16x64xf32>
    %cst_71 = arith.constant dense<0.000000e+00> : vector<2x64xf32>
    %127 = vector.multi_reduction <add>, %126, %cst_71 [1] : vector<2x16x64xf32> to vector<2x64xf32>
    %c0_72 = arith.constant 0 : index
    %c0_73 = arith.constant 0 : index
    %c0_74 = arith.constant 0 : index
    %128 = vector.load %arg13[%c0_72, %c0_73, %c0_74] : memref<2x1x64xf32, #tpu.memory_space<vmem>>, vector<1x1x64xf32>
    %129 = vector.shape_cast %128 : vector<1x1x64xf32> to vector<1x64xf32>
    %130 = vector.broadcast %129 : vector<1x64xf32> to vector<2x64xf32>
    %131 = arith.mulf %130, %58 : vector<2x64xf32>
    %132 = arith.addf %127, %131 : vector<2x64xf32>
    %cst_75 = arith.constant 0.000000e+00 : f32
    %133 = vector.broadcast %cst_75 : f32 to vector<2x64xf32>
    %134 = arith.subf %133, %21 : vector<2x64xf32>
    %135 = math.exp %134 : vector<2x64xf32>
    %cst_76 = arith.constant 1.000000e+00 : f32
    %136 = vector.broadcast %cst_76 : f32 to vector<2x64xf32>
    %137 = arith.addf %136, %135 : vector<2x64xf32>
    %cst_77 = arith.constant 1.000000e+00 : f32
    %138 = vector.broadcast %cst_77 : f32 to vector<2x64xf32>
    %139 = arith.divf %138, %137 : vector<2x64xf32>
    %140 = arith.mulf %21, %139 : vector<2x64xf32>
    %141 = arith.mulf %132, %140 : vector<2x64xf32>
    %142 = arith.truncf %141 : vector<2x64xf32> to vector<2x64xbf16>
    %c0_78 = arith.constant 0 : index
    %c0_79 = arith.constant 0 : index
    %c0_80 = arith.constant 0 : index
    %143 = vector.load %arg15[%c0_78, %c0_79, %c0_80] : memref<2x64x32xbf16, #tpu.memory_space<vmem>>, vector<1x64x32xbf16>
    %144 = vector.shape_cast %143 : vector<1x64x32xbf16> to vector<64x32xbf16>
    %cst_81 = arith.constant dense<0.000000e+00> : vector<2x32xf32>
    %145 = tpu.matmul %142, %144, %cst_81 {dimension_numbers = #tpu.dot_dimension_numbers<[1], [0], [0], [1], [0, 0, 1, 1], [], []>} : vector<2x64xbf16>, vector<64x32xbf16>, vector<2x32xf32> -> vector<2x32xf32>
    %146 = arith.addf %0, %145 : vector<2x32xf32>
    %147 = arith.mulf %146, %146 : vector<2x32xf32>
    %cst_82 = arith.constant dense<0.000000e+00> : vector<2xf32>
    %148 = vector.multi_reduction <add>, %147, %cst_82 [1] : vector<2x32xf32> to vector<2xf32>
    %149 = vector.shape_cast %148 : vector<2xf32> to vector<2x1xf32>
    %cst_83 = arith.constant 3.200000e+01 : f32
    %150 = vector.broadcast %cst_83 : f32 to vector<2x1xf32>
    %151 = arith.divf %149, %150 : vector<2x1xf32>
    %cst_84 = arith.constant 9.99999974E-6 : f32
    %152 = vector.broadcast %cst_84 : f32 to vector<2x1xf32>
    %153 = arith.addf %151, %152 : vector<2x1xf32>
    %154 = math.rsqrt %153 : vector<2x1xf32>
    %155 = vector.broadcast %154 : vector<2x1xf32> to vector<2x32xf32>
    %156 = arith.mulf %146, %155 : vector<2x32xf32>
    %c1_85 = arith.constant 1 : index
    %c0_86 = arith.constant 0 : index
    %c0_87 = arith.constant 0 : index
    %157 = vector.load %arg1[%c1_85, %c0_86, %c0_87] : memref<2x1x32xf32, #tpu.memory_space<vmem>>, vector<1x1x32xf32>
    %158 = vector.shape_cast %157 : vector<1x1x32xf32> to vector<1x32xf32>
    %159 = vector.broadcast %158 : vector<1x32xf32> to vector<2x32xf32>
    %160 = arith.mulf %156, %159 : vector<2x32xf32>
    %161 = arith.truncf %160 : vector<2x32xf32> to vector<2x32xbf16>
    %c1_88 = arith.constant 1 : index
    %c0_89 = arith.constant 0 : index
    %c0_90 = arith.constant 0 : index
    %162 = vector.load %arg2[%c1_88, %c0_89, %c0_90] : memref<2x32x64xbf16, #tpu.memory_space<vmem>>, vector<1x32x64xbf16>
    %163 = vector.shape_cast %162 : vector<1x32x64xbf16> to vector<32x64xbf16>
    %cst_91 = arith.constant dense<0.000000e+00> : vector<2x64xf32>
    %164 = tpu.matmul %161, %163, %cst_91 {dimension_numbers = #tpu.dot_dimension_numbers<[1], [0], [0], [1], [0, 0, 1, 1], [], []>} : vector<2x32xbf16>, vector<32x64xbf16>, vector<2x64xf32> -> vector<2x64xf32>
    %c1_92 = arith.constant 1 : index
    %c0_93 = arith.constant 0 : index
    %c0_94 = arith.constant 0 : index
    %165 = vector.load %arg3[%c1_92, %c0_93, %c0_94] : memref<2x32x64xbf16, #tpu.memory_space<vmem>>, vector<1x32x64xbf16>
    %166 = vector.shape_cast %165 : vector<1x32x64xbf16> to vector<32x64xbf16>
    %cst_95 = arith.constant dense<0.000000e+00> : vector<2x64xf32>
    %167 = tpu.matmul %161, %166, %cst_95 {dimension_numbers = #tpu.dot_dimension_numbers<[1], [0], [0], [1], [0, 0, 1, 1], [], []>} : vector<2x32xbf16>, vector<32x64xbf16>, vector<2x64xf32> -> vector<2x64xf32>
    %c1_96 = arith.constant 1 : index
    %c0_97 = arith.constant 0 : index
    %c0_98 = arith.constant 0 : index
    %168 = vector.load %arg4[%c1_96, %c0_97, %c0_98] : memref<2x4x64xf32, #tpu.memory_space<vmem>>, vector<1x4x64xf32>
    %169 = vector.shape_cast %168 : vector<1x4x64xf32> to vector<4x64xf32>
    %c1_99 = arith.constant 1 : index
    %c0_100 = arith.constant 0 : index
    %c0_101 = arith.constant 0 : index
    %c0_102 = arith.constant 0 : index
    %170 = vector.load %arg6[%c1_99, %c0_100, %c0_101, %c0_102] : memref<2x2x3x64xf32, #tpu.memory_space<vmem>>, vector<1x2x3x64xf32>
    %171 = vector.shape_cast %170 : vector<1x2x3x64xf32> to vector<2x3x64xf32>
    %172 = vector.extract_strided_slice %169 {offsets = [3, 0], sizes = [1, 64], strides = [1, 1]} : vector<4x64xf32> to vector<1x64xf32>
    %173 = vector.broadcast %172 : vector<1x64xf32> to vector<2x64xf32>
    %174 = arith.mulf %164, %173 : vector<2x64xf32>
    %c1_103 = arith.constant 1 : index
    %c0_104 = arith.constant 0 : index
    %c0_105 = arith.constant 0 : index
    %175 = vector.load %arg5[%c1_103, %c0_104, %c0_105] : memref<2x1x64xf32, #tpu.memory_space<vmem>>, vector<1x1x64xf32>
    %176 = vector.shape_cast %175 : vector<1x1x64xf32> to vector<1x64xf32>
    %177 = vector.broadcast %176 : vector<1x64xf32> to vector<2x64xf32>
    %178 = arith.addf %174, %177 : vector<2x64xf32>
    %179 = vector.extract_strided_slice %171 {offsets = [0, 0, 0], sizes = [2, 1, 64], strides = [1, 1, 1]} : vector<2x3x64xf32> to vector<2x1x64xf32>
    %180 = vector.shape_cast %179 : vector<2x1x64xf32> to vector<2x64xf32>
    %181 = vector.extract_strided_slice %169 {offsets = [0, 0], sizes = [1, 64], strides = [1, 1]} : vector<4x64xf32> to vector<1x64xf32>
    %182 = vector.broadcast %181 : vector<1x64xf32> to vector<2x64xf32>
    %183 = arith.mulf %180, %182 : vector<2x64xf32>
    %184 = arith.addf %178, %183 : vector<2x64xf32>
    %185 = vector.extract_strided_slice %171 {offsets = [0, 1, 0], sizes = [2, 1, 64], strides = [1, 1, 1]} : vector<2x3x64xf32> to vector<2x1x64xf32>
    %186 = vector.shape_cast %185 : vector<2x1x64xf32> to vector<2x64xf32>
    %187 = vector.extract_strided_slice %169 {offsets = [1, 0], sizes = [1, 64], strides = [1, 1]} : vector<4x64xf32> to vector<1x64xf32>
    %188 = vector.broadcast %187 : vector<1x64xf32> to vector<2x64xf32>
    %189 = arith.mulf %186, %188 : vector<2x64xf32>
    %190 = arith.addf %184, %189 : vector<2x64xf32>
    %191 = vector.extract_strided_slice %171 {offsets = [0, 2, 0], sizes = [2, 1, 64], strides = [1, 1, 1]} : vector<2x3x64xf32> to vector<2x1x64xf32>
    %192 = vector.shape_cast %191 : vector<2x1x64xf32> to vector<2x64xf32>
    %193 = vector.extract_strided_slice %169 {offsets = [2, 0], sizes = [1, 64], strides = [1, 1]} : vector<4x64xf32> to vector<1x64xf32>
    %194 = vector.broadcast %193 : vector<1x64xf32> to vector<2x64xf32>
    %195 = arith.mulf %192, %194 : vector<2x64xf32>
    %196 = arith.addf %190, %195 : vector<2x64xf32>
    %cst_106 = arith.constant 0.000000e+00 : f32
    %197 = vector.broadcast %cst_106 : f32 to vector<2x64xf32>
    %198 = arith.subf %197, %196 : vector<2x64xf32>
    %199 = math.exp %198 : vector<2x64xf32>
    %cst_107 = arith.constant 1.000000e+00 : f32
    %200 = vector.broadcast %cst_107 : f32 to vector<2x64xf32>
    %201 = arith.addf %200, %199 : vector<2x64xf32>
    %cst_108 = arith.constant 1.000000e+00 : f32
    %202 = vector.broadcast %cst_108 : f32 to vector<2x64xf32>
    %203 = arith.divf %202, %201 : vector<2x64xf32>
    %204 = arith.mulf %196, %203 : vector<2x64xf32>
    %205 = vector.extract_strided_slice %171 {offsets = [0, 1, 0], sizes = [2, 1, 64], strides = [1, 1, 1]} : vector<2x3x64xf32> to vector<2x1x64xf32>
    %c1_109 = arith.constant 1 : index
    %c0_110 = arith.constant 0 : index
    %c0_111 = arith.constant 0 : index
    %c0_112 = arith.constant 0 : index
    %206 = vector.load %arg19[%c1_109, %c0_110, %c0_111, %c0_112] : memref<2x2x3x64xf32, #tpu.memory_space<vmem>>, vector<1x2x1x64xf32>
    %207 = vector.shape_cast %206 : vector<1x2x1x64xf32> to vector<2x1x64xf32>
    %208 = vector.shape_cast %205 : vector<2x1x64xf32> to vector<1x2x1x64xf32>
    tpu.vector_store %arg19[%c1_109, %c0_110, %c0_111, %c0_112], %208 {strides = array<i32>} : memref<2x2x3x64xf32, #tpu.memory_space<vmem>>, vector<1x2x1x64xf32>,
    %209 = vector.extract_strided_slice %171 {offsets = [0, 2, 0], sizes = [2, 1, 64], strides = [1, 1, 1]} : vector<2x3x64xf32> to vector<2x1x64xf32>
    %c1_113 = arith.constant 1 : index
    %c0_114 = arith.constant 0 : index
    %c1_115 = arith.constant 1 : index
    %c0_116 = arith.constant 0 : index
    %210 = vector.load %arg19[%c1_113, %c0_114, %c1_115, %c0_116] : memref<2x2x3x64xf32, #tpu.memory_space<vmem>>, vector<1x2x1x64xf32>
    %211 = vector.shape_cast %210 : vector<1x2x1x64xf32> to vector<2x1x64xf32>
    %212 = vector.shape_cast %209 : vector<2x1x64xf32> to vector<1x2x1x64xf32>
    tpu.vector_store %arg19[%c1_113, %c0_114, %c1_115, %c0_116], %212 {strides = array<i32>} : memref<2x2x3x64xf32, #tpu.memory_space<vmem>>, vector<1x2x1x64xf32>,
    %213 = vector.shape_cast %164 : vector<2x64xf32> to vector<2x1x64xf32>
    %c1_117 = arith.constant 1 : index
    %c0_118 = arith.constant 0 : index
    %c2_119 = arith.constant 2 : index
    %c0_120 = arith.constant 0 : index
    %214 = vector.load %arg19[%c1_117, %c0_118, %c2_119, %c0_120] : memref<2x2x3x64xf32, #tpu.memory_space<vmem>>, vector<1x2x1x64xf32>
    %215 = vector.shape_cast %214 : vector<1x2x1x64xf32> to vector<2x1x64xf32>
    %216 = vector.shape_cast %213 : vector<2x1x64xf32> to vector<1x2x1x64xf32>
    tpu.vector_store %arg19[%c1_117, %c0_118, %c2_119, %c0_120], %216 {strides = array<i32>} : memref<2x2x3x64xf32, #tpu.memory_space<vmem>>, vector<1x2x1x64xf32>,
    %217 = arith.truncf %204 : vector<2x64xf32> to vector<2x64xbf16>
    %c1_121 = arith.constant 1 : index
    %c0_122 = arith.constant 0 : index
    %c0_123 = arith.constant 0 : index
    %218 = vector.load %arg7[%c1_121, %c0_122, %c0_123] : memref<2x64x2xbf16, #tpu.memory_space<vmem>>, vector<1x64x2xbf16>
    %219 = vector.shape_cast %218 : vector<1x64x2xbf16> to vector<64x2xbf16>
    %cst_124 = arith.constant dense<0.000000e+00> : vector<2x2xf32>
    %220 = tpu.matmul %217, %219, %cst_124 {dimension_numbers = #tpu.dot_dimension_numbers<[1], [0], [0], [1], [0, 0, 1, 1], [], []>} : vector<2x64xbf16>, vector<64x2xbf16>, vector<2x2xf32> -> vector<2x2xf32>
    %c1_125 = arith.constant 1 : index
    %c0_126 = arith.constant 0 : index
    %c0_127 = arith.constant 0 : index
    %221 = vector.load %arg8[%c1_125, %c0_126, %c0_127] : memref<2x64x16xbf16, #tpu.memory_space<vmem>>, vector<1x64x16xbf16>
    %222 = vector.shape_cast %221 : vector<1x64x16xbf16> to vector<64x16xbf16>
    %cst_128 = arith.constant dense<0.000000e+00> : vector<2x16xf32>
    %223 = tpu.matmul %217, %222, %cst_128 {dimension_numbers = #tpu.dot_dimension_numbers<[1], [0], [0], [1], [0, 0, 1, 1], [], []>} : vector<2x64xbf16>, vector<64x16xbf16>, vector<2x16xf32> -> vector<2x16xf32>
    %c1_129 = arith.constant 1 : index
    %c0_130 = arith.constant 0 : index
    %c0_131 = arith.constant 0 : index
    %224 = vector.load %arg9[%c1_129, %c0_130, %c0_131] : memref<2x64x16xbf16, #tpu.memory_space<vmem>>, vector<1x64x16xbf16>
    %225 = vector.shape_cast %224 : vector<1x64x16xbf16> to vector<64x16xbf16>
    %cst_132 = arith.constant dense<0.000000e+00> : vector<2x16xf32>
    %226 = tpu.matmul %217, %225, %cst_132 {dimension_numbers = #tpu.dot_dimension_numbers<[1], [0], [0], [1], [0, 0, 1, 1], [], []>} : vector<2x64xbf16>, vector<64x16xbf16>, vector<2x16xf32> -> vector<2x16xf32>
    %227 = arith.truncf %220 : vector<2x2xf32> to vector<2x2xbf16>
    %c1_133 = arith.constant 1 : index
    %c0_134 = arith.constant 0 : index
    %c0_135 = arith.constant 0 : index
    %228 = vector.load %arg10[%c1_133, %c0_134, %c0_135] : memref<2x2x64xbf16, #tpu.memory_space<vmem>>, vector<1x2x64xbf16>
    %229 = vector.shape_cast %228 : vector<1x2x64xbf16> to vector<2x64xbf16>
    %cst_136 = arith.constant dense<0.000000e+00> : vector<2x64xf32>
    %230 = tpu.matmul %227, %229, %cst_136 {dimension_numbers = #tpu.dot_dimension_numbers<[1], [0], [0], [1], [0, 0, 1, 1], [], []>} : vector<2x2xbf16>, vector<2x64xbf16>, vector<2x64xf32> -> vector<2x64xf32>
    %c1_137 = arith.constant 1 : index
    %c0_138 = arith.constant 0 : index
    %c0_139 = arith.constant 0 : index
    %231 = vector.load %arg11[%c1_137, %c0_138, %c0_139] : memref<2x1x64xf32, #tpu.memory_space<vmem>>, vector<1x1x64xf32>
    %232 = vector.shape_cast %231 : vector<1x1x64xf32> to vector<1x64xf32>
    %233 = vector.broadcast %232 : vector<1x64xf32> to vector<2x64xf32>
    %234 = arith.addf %230, %233 : vector<2x64xf32>
    %cst_140 = arith.constant 2.000000e+01 : f32
    %235 = vector.broadcast %cst_140 : f32 to vector<2x64xf32>
    %236 = arith.cmpf ogt, %234, %235 : vector<2x64xf32>
    %cst_141 = arith.constant 2.000000e+01 : f32
    %237 = vector.broadcast %cst_141 : f32 to vector<2x64xf32>
    %238 = arith.minimumf %234, %237 : vector<2x64xf32>
    %239 = math.exp %238 : vector<2x64xf32>
    %cst_142 = arith.constant 1.000000e+00 : f32
    %240 = vector.broadcast %cst_142 : f32 to vector<2x64xf32>
    %241 = arith.addf %240, %239 : vector<2x64xf32>
    %242 = math.log %241 : vector<2x64xf32>
    %243 = arith.select %236, %234, %242 : vector<2x64xi1>, vector<2x64xf32>
    %c1_143 = arith.constant 1 : index
    %c0_144 = arith.constant 0 : index
    %c0_145 = arith.constant 0 : index
    %244 = vector.load %arg12[%c1_143, %c0_144, %c0_145] : memref<2x16x64xf32, #tpu.memory_space<vmem>>, vector<1x16x64xf32>
    %245 = vector.shape_cast %244 : vector<1x16x64xf32> to vector<16x64xf32>
    %246 = math.exp %245 : vector<16x64xf32>
    %cst_146 = arith.constant 0.000000e+00 : f32
    %247 = vector.broadcast %cst_146 : f32 to vector<16x64xf32>
    %248 = arith.subf %247, %246 : vector<16x64xf32>
    %249 = vector.shape_cast %243 : vector<2x64xf32> to vector<2x1x64xf32>
    %250 = vector.shape_cast %248 : vector<16x64xf32> to vector<1x16x64xf32>
    %251 = vector.broadcast %249 : vector<2x1x64xf32> to vector<2x16x64xf32>
    %252 = vector.broadcast %250 : vector<1x16x64xf32> to vector<2x16x64xf32>
    %253 = arith.mulf %251, %252 : vector<2x16x64xf32>
    %254 = math.exp %253 : vector<2x16x64xf32>
    %255 = vector.shape_cast %243 : vector<2x64xf32> to vector<2x1x64xf32>
    %256 = vector.shape_cast %223 : vector<2x16xf32> to vector<2x16x1xf32>
    %257 = vector.broadcast %255 : vector<2x1x64xf32> to vector<2x16x64xf32>
    %258 = vector.broadcast %256 : vector<2x16x1xf32> to vector<2x16x64xf32>
    %259 = arith.mulf %257, %258 : vector<2x16x64xf32>
    %260 = vector.shape_cast %204 : vector<2x64xf32> to vector<2x1x64xf32>
    %261 = vector.broadcast %260 : vector<2x1x64xf32> to vector<2x16x64xf32>
    %262 = arith.mulf %259, %261 : vector<2x16x64xf32>
    %c1_147 = arith.constant 1 : index
    %c0_148 = arith.constant 0 : index
    %c0_149 = arith.constant 0 : index
    %c0_150 = arith.constant 0 : index
    %263 = vector.load %arg14[%c1_147, %c0_148, %c0_149, %c0_150] : memref<2x2x16x64xf32, #tpu.memory_space<vmem>>, vector<1x2x16x64xf32>
    %264 = vector.shape_cast %263 : vector<1x2x16x64xf32> to vector<2x16x64xf32>
    %265 = arith.mulf %264, %254 : vector<2x16x64xf32>
    %266 = arith.addf %265, %262 : vector<2x16x64xf32>
    %c1_151 = arith.constant 1 : index
    %c0_152 = arith.constant 0 : index
    %c0_153 = arith.constant 0 : index
    %c0_154 = arith.constant 0 : index
    %267 = vector.load %arg20[%c1_151, %c0_152, %c0_153, %c0_154] : memref<2x2x16x64xf32, #tpu.memory_space<vmem>>, vector<1x2x16x64xf32>
    %268 = vector.shape_cast %267 : vector<1x2x16x64xf32> to vector<2x16x64xf32>
    %269 = vector.shape_cast %266 : vector<2x16x64xf32> to vector<1x2x16x64xf32>
    tpu.vector_store %arg20[%c1_151, %c0_152, %c0_153, %c0_154], %269 {strides = array<i32>} : memref<2x2x16x64xf32, #tpu.memory_space<vmem>>, vector<1x2x16x64xf32>,
    %270 = vector.shape_cast %226 : vector<2x16xf32> to vector<2x16x1xf32>
    %271 = vector.broadcast %270 : vector<2x16x1xf32> to vector<2x16x64xf32>
    %272 = arith.mulf %266, %271 : vector<2x16x64xf32>
    %cst_155 = arith.constant dense<0.000000e+00> : vector<2x64xf32>
    %273 = vector.multi_reduction <add>, %272, %cst_155 [1] : vector<2x16x64xf32> to vector<2x64xf32>
    %c1_156 = arith.constant 1 : index
    %c0_157 = arith.constant 0 : index
    %c0_158 = arith.constant 0 : index
    %274 = vector.load %arg13[%c1_156, %c0_157, %c0_158] : memref<2x1x64xf32, #tpu.memory_space<vmem>>, vector<1x1x64xf32>
    %275 = vector.shape_cast %274 : vector<1x1x64xf32> to vector<1x64xf32>
    %276 = vector.broadcast %275 : vector<1x64xf32> to vector<2x64xf32>
    %277 = arith.mulf %276, %204 : vector<2x64xf32>
    %278 = arith.addf %273, %277 : vector<2x64xf32>
    %cst_159 = arith.constant 0.000000e+00 : f32
    %279 = vector.broadcast %cst_159 : f32 to vector<2x64xf32>
    %280 = arith.subf %279, %167 : vector<2x64xf32>
    %281 = math.exp %280 : vector<2x64xf32>
    %cst_160 = arith.constant 1.000000e+00 : f32
    %282 = vector.broadcast %cst_160 : f32 to vector<2x64xf32>
    %283 = arith.addf %282, %281 : vector<2x64xf32>
    %cst_161 = arith.constant 1.000000e+00 : f32
    %284 = vector.broadcast %cst_161 : f32 to vector<2x64xf32>
    %285 = arith.divf %284, %283 : vector<2x64xf32>
    %286 = arith.mulf %167, %285 : vector<2x64xf32>
    %287 = arith.mulf %278, %286 : vector<2x64xf32>
    %288 = arith.truncf %287 : vector<2x64xf32> to vector<2x64xbf16>
    %c1_162 = arith.constant 1 : index
    %c0_163 = arith.constant 0 : index
    %c0_164 = arith.constant 0 : index
    %289 = vector.load %arg15[%c1_162, %c0_163, %c0_164] : memref<2x64x32xbf16, #tpu.memory_space<vmem>>, vector<1x64x32xbf16>
    %290 = vector.shape_cast %289 : vector<1x64x32xbf16> to vector<64x32xbf16>
    %cst_165 = arith.constant dense<0.000000e+00> : vector<2x32xf32>
    %291 = tpu.matmul %288, %290, %cst_165 {dimension_numbers = #tpu.dot_dimension_numbers<[1], [0], [0], [1], [0, 0, 1, 1], [], []>} : vector<2x64xbf16>, vector<64x32xbf16>, vector<2x32xf32> -> vector<2x32xf32>
    %292 = arith.addf %146, %291 : vector<2x32xf32>
    %293 = arith.mulf %292, %292 : vector<2x32xf32>
    %cst_166 = arith.constant dense<0.000000e+00> : vector<2xf32>
    %294 = vector.multi_reduction <add>, %293, %cst_166 [1] : vector<2x32xf32> to vector<2xf32>
    %295 = vector.shape_cast %294 : vector<2xf32> to vector<2x1xf32>
    %cst_167 = arith.constant 3.200000e+01 : f32
    %296 = vector.broadcast %cst_167 : f32 to vector<2x1xf32>
    %297 = arith.divf %295, %296 : vector<2x1xf32>
    %cst_168 = arith.constant 9.99999974E-6 : f32
    %298 = vector.broadcast %cst_168 : f32 to vector<2x1xf32>
    %299 = arith.addf %297, %298 : vector<2x1xf32>
    %300 = math.rsqrt %299 : vector<2x1xf32>
    %301 = vector.broadcast %300 : vector<2x1xf32> to vector<2x32xf32>
    %302 = arith.mulf %292, %301 : vector<2x32xf32>
    %c0_169 = arith.constant 0 : index
    %c0_170 = arith.constant 0 : index
    %303 = vector.load %arg16[%c0_169, %c0_170] : memref<1x32xf32, #tpu.memory_space<vmem>>, vector<1x32xf32>
    %304 = vector.broadcast %303 : vector<1x32xf32> to vector<2x32xf32>
    %305 = arith.mulf %302, %304 : vector<2x32xf32>
    %306 = arith.truncf %305 : vector<2x32xf32> to vector<2x32xbf16>
    %c0_171 = arith.constant 0 : index
    %c0_172 = arith.constant 0 : index
    %307 = vector.load %arg17[%c0_171, %c0_172] : memref<32x128xbf16, #tpu.memory_space<vmem>>, vector<32x128xbf16>
    %cst_173 = arith.constant dense<0.000000e+00> : vector<2x128xf32>
    %308 = tpu.matmul %306, %307, %cst_173 {dimension_numbers = #tpu.dot_dimension_numbers<[1], [0], [0], [1], [0, 0, 1, 1], [], []>} : vector<2x32xbf16>, vector<32x128xbf16>, vector<2x128xf32> -> vector<2x128xf32>
    %c0_174 = arith.constant 0 : index
    %c0_175 = arith.constant 0 : index
    %309 = vector.load %arg18[%c0_174, %c0_175] : memref<2x128xf32, #tpu.memory_space<vmem>>, vector<2x128xf32>
    tpu.vector_store %arg18[%c0_174, %c0_175], %308 {strides = array<i32>} : memref<2x128xf32, #tpu.memory_space<vmem>>, vector<2x128xf32>,
    return
  }
}

</mosaic_0001>

<llo_original>
// kernel: mamba_tt_forward.1
$region0: #{mamba_tt_forward.1}
  #allocation0 [shape = 'u32[]', space=smem, size = 0x4, offset = 0x4, fixed_abs, tag = 'smem constant byte address 0x4 - core index']
  #allocation1 [shape = 'u32[144,128]{1,0:T(1,128)}', space=vmem, size = 0x12000, scoped, tag = 'internal scratch']
  %s0 = inlined_call_operand.vmem [shape: f32[2,32], index: 0, kind: input, shape index: {}]
  %s1 = inlined_call_operand.vmem [shape: f32[2,1,32], index: 1, kind: input, shape index: {}]
  %s2 = inlined_call_operand.vmem [shape: bf16[2,32,64], index: 2, kind: input, shape index: {}]
  %s3 = inlined_call_operand.vmem [shape: bf16[2,32,64], index: 3, kind: input, shape index: {}]
  %s4 = inlined_call_operand.vmem [shape: f32[2,4,64], index: 4, kind: input, shape index: {}]
  %s5 = inlined_call_operand.vmem [shape: f32[2,1,64], index: 5, kind: input, shape index: {}]
  %s6 = inlined_call_operand.vmem [shape: f32[2,2,3,64], index: 6, kind: input, shape index: {}, may-alias: {6,19}]
  %s7 = inlined_call_operand.vmem [shape: bf16[2,64,2], index: 7, kind: input, shape index: {}]
  %s8 = inlined_call_operand.vmem [shape: bf16[2,64,16], index: 8, kind: input, shape index: {}]
  %s9 = inlined_call_operand.vmem [shape: bf16[2,64,16], index: 9, kind: input, shape index: {}]
  %s10 = inlined_call_operand.vmem [shape: bf16[2,2,64], index: 10, kind: input, shape index: {}]
  %s11 = inlined_call_operand.vmem [shape: f32[2,1,64], index: 11, kind: input, shape index: {}]
  %s12 = inlined_call_operand.vmem [shape: f32[2,16,64], index: 12, kind: input, shape index: {}]
  %s13 = inlined_call_operand.vmem [shape: f32[2,1,64], index: 13, kind: input, shape index: {}]
  %s14 = inlined_call_operand.vmem [shape: f32[2,2,16,64], index: 14, kind: input, shape index: {}, may-alias: {14,20}]
  %s15 = inlined_call_operand.vmem [shape: bf16[2,64,32], index: 15, kind: input, shape index: {}]
  %s16 = inlined_call_operand.vmem [shape: f32[1,32], index: 16, kind: input, shape index: {}]
  %s17 = inlined_call_operand.vmem [shape: bf16[32,128], index: 17, kind: input, shape index: {}]
  %s18 = inlined_call_operand.hbm [shape: f32[2,128], index: 18, kind: output, shape index: {0}]
  %s19 = inlined_call_operand.vmem [shape: f32[2,2,3,64], index: 19, kind: output, shape index: {1}, may-alias: {6,19}]
  %s20 = inlined_call_operand.vmem [shape: f32[2,2,16,64], index: 20, kind: output, shape index: {2}, may-alias: {14,20}]
  %21 = xla_tuple %s18, %s19, %s20
  %s22 = sld [smem:[#allocation0]]
  $region98: #{mamba_tt_forward.1} parent=0
    _
  %s24 = ssub.s32 1, %s22
  %s25 = scalar_select 0, %s24, %s22
  $region1: #{mamba_tt_forward.1} parent=0
    #allocation2 [shape = 'u8[1024]{0}', space=vmem, size = 0x400, scoped, tag = 'output window, operand 0, single buffered']
    #allocation3 [shape = 's32[1]{0}', space=sflag, size = 0x4, scoped, tag = 'scoped memory for mamba_tt_forward.1']
    %26 = vsyncpa [#allocation3], 0
    // Predicated region
    $region2: #{mamba_tt_forward.1} parent=1 // pred_check
      _
    $region3: #{mamba_tt_forward.1} parent=1 // pred_check_branch
      %28 = sbr.rel (0) target = $region5
    $region4: #{mamba_tt_forward.1} parent=1 // pred_region
      _
    $region5: #{mamba_tt_forward.1} parent=1 // pred_fallthru
      _
    // Predicated region
    $region6: #{mamba_tt_forward.1} parent=1 // pred_check
      _
    $region7: #{mamba_tt_forward.1} parent=1 // pred_check_branch
      %30 = sbr.rel (0) target = $region9
    $region8: #{mamba_tt_forward.1} parent=1 // pred_region
      _
    $region9: #{mamba_tt_forward.1} parent=1 // pred_fallthru
      _
    // Predicated region
    $region10: #{mamba_tt_forward.1} parent=1 // pred_check
      _
    $region11: #{mamba_tt_forward.1} parent=1 // pred_check_branch
      %32 = sbr.rel (0) target = $region13
    $region12: #{mamba_tt_forward.1} parent=1 // pred_region
      _
    $region13: #{mamba_tt_forward.1} parent=1 // pred_fallthru
      _
    // Predicated region
    $region14: #{mamba_tt_forward.1} parent=1 // pred_check
      _
    $region15: #{mamba_tt_forward.1} parent=1 // pred_check_branch
      %34 = sbr.rel (0) target = $region17
    $region16: #{mamba_tt_forward.1} parent=1 // pred_region
      _
    $region17: #{mamba_tt_forward.1} parent=1 // pred_fallthru
      _
    // Predicated region
    $region18: #{mamba_tt_forward.1} parent=1 // pred_check
      _
    $region19: #{mamba_tt_forward.1} parent=1 // pred_check_branch
      %36 = sbr.rel (0) target = $region21
    $region20: #{mamba_tt_forward.1} parent=1 // pred_region
      _
    $region21: #{mamba_tt_forward.1} parent=1 // pred_fallthru
      _
    // Predicated region
    $region22: #{mamba_tt_forward.1} parent=1 // pred_check
      _
    $region23: #{mamba_tt_forward.1} parent=1 // pred_check_branch
      %38 = sbr.rel (0) target = $region25
    $region24: #{mamba_tt_forward.1} parent=1 // pred_region
      _
    $region25: #{mamba_tt_forward.1} parent=1 // pred_fallthru
      _
    // Predicated region
    $region26: #{mamba_tt_forward.1} parent=1 // pred_check
      _
    $region27: #{mamba_tt_forward.1} parent=1 // pred_check_branch
      %40 = sbr.rel (0) target = $region29
    $region28: #{mamba_tt_forward.1} parent=1 // pred_region
      _
    $region29: #{mamba_tt_forward.1} parent=1 // pred_fallthru
      _
    // Predicated region
    $region30: #{mamba_tt_forward.1} parent=1 // pred_check
      _
    $region31: #{mamba_tt_forward.1} parent=1 // pred_check_branch
      %42 = sbr.rel (0) target = $region33
    $region32: #{mamba_tt_forward.1} parent=1 // pred_region
      _
    $region33: #{mamba_tt_forward.1} parent=1 // pred_fallthru
      _
    // Predicated region
    $region34: #{mamba_tt_forward.1} parent=1 // pred_check
      _
    $region35: #{mamba_tt_forward.1} parent=1 // pred_check_branch
      %44 = sbr.rel (0) target = $region37
    $region36: #{mamba_tt_forward.1} parent=1 // pred_region
      _
    $region37: #{mamba_tt_forward.1} parent=1 // pred_fallthru
      _
    // Predicated region
    $region38: #{mamba_tt_forward.1} parent=1 // pred_check
      _
    $region39: #{mamba_tt_forward.1} parent=1 // pred_check_branch
      %46 = sbr.rel (0) target = $region41
    $region40: #{mamba_tt_forward.1} parent=1 // pred_region
      _
    $region41: #{mamba_tt_forward.1} parent=1 // pred_fallthru
      _
    // Predicated region
    $region42: #{mamba_tt_forward.1} parent=1 // pred_check
      _
    $region43: #{mamba_tt_forward.1} parent=1 // pred_check_branch
      %48 = sbr.rel (0) target = $region45
    $region44: #{mamba_tt_forward.1} parent=1 // pred_region
      _
    $region45: #{mamba_tt_forward.1} parent=1 // pred_fallthru
      _
    // Predicated region
    $region46: #{mamba_tt_forward.1} parent=1 // pred_check
      _
    $region47: #{mamba_tt_forward.1} parent=1 // pred_check_branch
      %50 = sbr.rel (0) target = $region49
    $region48: #{mamba_tt_forward.1} parent=1 // pred_region
      _
    $region49: #{mamba_tt_forward.1} parent=1 // pred_fallthru
      _
    // Predicated region
    $region50: #{mamba_tt_forward.1} parent=1 // pred_check
      _
    $region51: #{mamba_tt_forward.1} parent=1 // pred_check_branch
      %52 = sbr.rel (0) target = $region53
    $region52: #{mamba_tt_forward.1} parent=1 // pred_region
      _
    $region53: #{mamba_tt_forward.1} parent=1 // pred_fallthru
      _
    // Predicated region
    $region54: #{mamba_tt_forward.1} parent=1 // pred_check
      _
    $region55: #{mamba_tt_forward.1} parent=1 // pred_check_branch
      %54 = sbr.rel (0) target = $region57
    $region56: #{mamba_tt_forward.1} parent=1 // pred_region
      _
    $region57: #{mamba_tt_forward.1} parent=1 // pred_fallthru
      _
    // Predicated region
    $region58: #{mamba_tt_forward.1} parent=1 // pred_check
      _
    $region59: #{mamba_tt_forward.1} parent=1 // pred_check_branch
      %56 = sbr.rel (0) target = $region61
    $region60: #{mamba_tt_forward.1} parent=1 // pred_region
      _
    $region61: #{mamba_tt_forward.1} parent=1 // pred_fallthru
      _
    // Predicated region
    $region62: #{mamba_tt_forward.1} parent=1 // pred_check
      _
    $region63: #{mamba_tt_forward.1} parent=1 // pred_check_branch
      %58 = sbr.rel (0) target = $region65
    $region64: #{mamba_tt_forward.1} parent=1 // pred_region
      _
    $region65: #{mamba_tt_forward.1} parent=1 // pred_fallthru
      _
    // Predicated region
    $region66: #{mamba_tt_forward.1} parent=1 // pred_check
      _
    $region67: #{mamba_tt_forward.1} parent=1 // pred_check_branch
      %60 = sbr.rel (0) target = $region69
    $region68: #{mamba_tt_forward.1} parent=1 // pred_region
      _
    $region69: #{mamba_tt_forward.1} parent=1 // pred_fallthru
      _
    // Predicated region
    $region70: #{mamba_tt_forward.1} parent=1 // pred_check
      _
    $region71: #{mamba_tt_forward.1} parent=1 // pred_check_branch
      %62 = sbr.rel (0) target = $region73
    $region72: #{mamba_tt_forward.1} parent=1 // pred_region
      _
    $region73: #{mamba_tt_forward.1} parent=1 // pred_fallthru
      _
    %v64 = vld [vmem:[%s0] sm:$0x3]
    %v65 = vmul.f32 %v64, %v64
    %vm66 = vcmask 254976
    %v67 = vsel %vm66, %v65, 0.0
    %68 = vadd.xlane.f32.xlu0 %v67
    %v69 = vpop.xlane.xlu0 %68
    %v70 = vrcp.pop 32.0
    %v71 = vmul.f32 %v69, %v70
    %v72 = vadd.f32 %v71, 1e-05
    %v73 = vrsqrt.pop %v72
    %v74 = vmul.f32 %v64, %v73
    %v75 = vld [vmem:[%s1] sm:$0x1]
    %v77 = vlaneseq
    %v78 = vshrl.u32 %v77, 7
    %v79 = vsub.s32 0, %v78
    %v80 = vrot.slane %v75, %v79
    %v82 = vmul.f32 %v74, %v80
    %v83 = vpack.c.bf16 %v82, %v82
    %v84 = vld [vmem:[%s2] sm:$0xf]
    %v85 = vld [vmem:[%s2 + $0x4] sm:$0xf]
    %v86 = vld [vmem:[%s2 + $0x8] sm:$0xf]
    %v87 = vld [vmem:[%s2 + $0xc] sm:$0xf]
    %v92 = vunpack.c.l.b16 %v84
    %v93 = vunpack.c.l.b16 %v85
    %v94 = vunpack.c.l.b16 %v86
    %v95 = vunpack.c.l.b16 %v87
    %v96 = vpack.c.b16 %v93, %v92
    %v97 = vpack.c.b16 %v95, %v94
    %vm100 = vcmask 261120
    %v102 = vsel %vm100, %v83, 0
    %104 = vmatprep.subr.bf16.mxu0 0
    %105 = vmatpush1.bf16.msra.mxu0 %v96
    %106 = vmatprep.subr.bf16.mxu0 0
    %107 = vmatpush1.bf16.msra.mxu0 %v97
    %108 = vmatprep.subr.bf16.mxu0 0
    %109 = vmatpush1.bf16.msra.mxu0 0
    %110 = vmatprep.subr.bf16.mxu0 0
    %111 = vmatpush1.bf16.msra.mxu0 0
    %112 = vmatprep.subr.bf16.mxu0 0
    %113 = vmatpush1.bf16.msra.mxu0 0
    %114 = vmatprep.subr.bf16.mxu0 0
    %115 = vmatpush1.bf16.msra.mxu0 0
    %116 = vmatprep.subr.bf16.mxu0 0
    %117 = vmatpush1.bf16.msra.mxu0 0
    %118 = vmatprep.subr.bf16.mxu0 0
    %119 = vmatpush1.bf16.msra.mxu0 0
    %120 = vmatprep.subr.bf16.mxu0 0
    %121 = vmatpush1.bf16.msra.mxu0 0
    %122 = vmatprep.subr.bf16.mxu0 0
    %123 = vmatpush1.bf16.msra.mxu0 0
    %124 = vmatprep.subr.bf16.mxu0 0
    %125 = vmatpush1.bf16.msra.mxu0 0
    %126 = vmatprep.subr.bf16.mxu0 0
    %127 = vmatpush1.bf16.msra.mxu0 0
    %128 = vmatprep.subr.bf16.mxu0 0
    %129 = vmatpush1.bf16.msra.mxu0 0
    %130 = vmatprep.subr.bf16.mxu0 0
    %131 = vmatpush1.bf16.msra.mxu0 0
    %132 = vmatprep.subr.bf16.mxu0 0
    %133 = vmatpush1.bf16.msra.mxu0 0
    %134 = vmatprep.subr.bf16.mxu0 0
    %135 = vmatpush1.bf16.msra.mxu0 0
    %136 = vmatprep.mubr.bf16.mxu0 0
    %137 = vmatmul.mubr.bf16.gmra.mrb[0].mxu0 %v102
    %v138 = vpop.f32.mrb[0].mxu0
    %v139 = vadd.f32 0.0, %v138
    %v140 = vpop.f32.mrb[0].mxu0
    %v141 = vpop.f32.mrb[0].mxu0
    %v142 = vpop.f32.mrb[0].mxu0
    %143 = vdwg.mxu0
    %v144 = vld [vmem:[%s3] sm:$0xf]
    %v145 = vld [vmem:[%s3 + $0x4] sm:$0xf]
    %v146 = vld [vmem:[%s3 + $0x8] sm:$0xf]
    %v147 = vld [vmem:[%s3 + $0xc] sm:$0xf]
    %v152 = vunpack.c.l.b16 %v144
    %v153 = vunpack.c.l.b16 %v145
    %v154 = vunpack.c.l.b16 %v146
    %v155 = vunpack.c.l.b16 %v147
    %v156 = vpack.c.b16 %v153, %v152
    %v157 = vpack.c.b16 %v155, %v154
    %160 = vmatprep.subr.bf16.mxu0 0
    %161 = vmatpush1.bf16.msra.mxu0 %v156
    %162 = vmatprep.subr.bf16.mxu0 0
    %163 = vmatpush1.bf16.msra.mxu0 %v157
    %164 = vmatprep.subr.bf16.mxu0 0
    %165 = vmatpush1.bf16.msra.mxu0 0
    %166 = vmatprep.subr.bf16.mxu0 0
    %167 = vmatpush1.bf16.msra.mxu0 0
    %168 = vmatprep.subr.bf16.mxu0 0
    %169 = vmatpush1.bf16.msra.mxu0 0
    %170 = vmatprep.subr.bf16.mxu0 0
    %171 = vmatpush1.bf16.msra.mxu0 0
    %172 = vmatprep.subr.bf16.mxu0 0
    %173 = vmatpush1.bf16.msra.mxu0 0
    %174 = vmatprep.subr.bf16.mxu0 0
    %175 = vmatpush1.bf16.msra.mxu0 0
    %176 = vmatprep.subr.bf16.mxu0 0
    %177 = vmatpush1.bf16.msra.mxu0 0
    %178 = vmatprep.subr.bf16.mxu0 0
    %179 = vmatpush1.bf16.msra.mxu0 0
    %180 = vmatprep.subr.bf16.mxu0 0
    %181 = vmatpush1.bf16.msra.mxu0 0
    %182 = vmatprep.subr.bf16.mxu0 0
    %183 = vmatpush1.bf16.msra.mxu0 0
    %184 = vmatprep.subr.bf16.mxu0 0
    %185 = vmatpush1.bf16.msra.mxu0 0
    %186 = vmatprep.subr.bf16.mxu0 0
    %187 = vmatpush1.bf16.msra.mxu0 0
    %188 = vmatprep.subr.bf16.mxu0 0
    %189 = vmatpush1.bf16.msra.mxu0 0
    %190 = vmatprep.subr.bf16.mxu0 0
    %191 = vmatpush1.bf16.msra.mxu0 0
    %192 = vmatprep.mubr.bf16.mxu0 0
    %193 = vmatmul.mubr.bf16.gmra.mrb[0].mxu0 %v102
    %v194 = vpop.f32.mrb[0].mxu0
    %v195 = vadd.f32 0.0, %v194
    %v196 = vpop.f32.mrb[0].mxu0
    %v197 = vpop.f32.mrb[0].mxu0
    %v198 = vpop.f32.mrb[0].mxu0
    %199 = vdwg.mxu0
    %v200 = vld [vmem:[%s4] sm:$0xf]
    %v201 = vld [vmem:[%s6] sm:$0x7]
    %v202 = vld [vmem:[%s6 + $0x4] sm:$0x7]
    %v203 = vlaneseq
    %v204 = vshrl.u32 %v203, 7
    %v205 = vsub.s32 3, %v204
    %v206 = vrot.slane %v200, %v205
    %v207 = vmul.f32 %v139, %v206
    %v208 = vld [vmem:[%s5] sm:$0x1]
    %v210 = vlaneseq
    %v211 = vshrl.u32 %v210, 7
    %v212 = vsub.s32 0, %v211
    %v213 = vrot.slane %v208, %v212
    %v215 = vadd.f32 %v207, %v213
    %v216 = vlaneseq
    %v217 = vshrl.u32 %v216, 7
    %v218 = vsub.s32 0, %v217
    %v219 = vrot.slane %v200, %v218
    %v220 = vmul.f32 %v201, %v219
    %v221 = vmul.f32 %v202, %v219
    %v224 = vrot.slane %v221, 7
    %vm225 = vcmask 1041409
    %v226 = vsel %vm225, %v224, %v220
    %v228 = vadd.f32 %v215, %v226
    %v229 = vlaneseq
    %v230 = vshrl.u32 %v229, 7
    %v231 = vsub.s32 1, %v230
    %v232 = vrot.slane %v200, %v231
    %v233 = vmul.f32 %v201, %v232
    %v234 = vmul.f32 %v202, %v232
    %v237 = vrot.slane %v233, 1
    %v238 = vsel %vm225, %v234, %v237
    %v240 = vadd.f32 %v228, %v238
    %v241 = vlaneseq
    %v242 = vshrl.u32 %v241, 7
    %v243 = vsub.s32 2, %v242
    %v244 = vrot.slane %v200, %v243
    %v245 = vmul.f32 %v201, %v244
    %v246 = vmul.f32 %v202, %v244
    %v249 = vrot.slane %v245, 2
    %v250 = vrot.slane %v246, 1
    %v251 = vsel %vm225, %v250, %v249
    %v253 = vadd.f32 %v240, %v251
    %v254 = vsub.f32 0.0, %v253
    %v255 = vmul.f32 %v254, 1.442695
    %v256 = vpow.pop %v255
    %v257 = vadd.f32 %v256, 1.0
    %v258 = vrcp.pop %v257
    %v259 = vmul.f32 1.0, %v258
    %v260 = vmul.f32 %v253, %v259
    %vm261 = vcmask 517121
    %262 = vst.msk [vmem:[%s19 - $0x1] sm:$0x2] %vm261, %v201
    %263 = vst.msk [vmem:[%s19 + $0x3] sm:$0x2] %vm261, %v202
    %vm264 = vcmask 518146
    %265 = vst.msk [vmem:[%s19 - $0x1] sm:$0x4] %vm264, %v201
    %266 = vst.msk [vmem:[%s19 + $0x3] sm:$0x4] %vm264, %v202
    %v269 = vunpack.c.l.s4 1966171168
    %v270 = vunpack.c.0.s8 %v269
    %v271 = vlaneseq
    %v272 = vshrl.u32 %v271, 7
    %v273 = vsub.s32 %v270, %v272
    %v274 = vrot.slane %v139, %v273
    %v275 = vcombine.high %v274, %v274
    %v277 = vunpack.c.l.s4 1966171168
    %v278 = vunpack.c.0.s8 %v277
    %v279 = vlaneseq
    %v280 = vshrl.u32 %v279, 7
    %v281 = vsub.s32 %v278, %v280
    %v282 = vrot.slane %v274, %v281
    %v284 = vunpack.c.l.s4 1966171168
    %v285 = vunpack.c.0.s8 %v284
    %v286 = vlaneseq
    %v287 = vshrl.u32 %v286, 7
    %v288 = vsub.s32 %v285, %v287
    %v289 = vrot.slane %v275, %v288
    %vm292 = vcmask 516096
    %293 = vst.msk [vmem:[%s19 + $0x2] sm:$0x1] %vm292, %v282
    %294 = vst.msk [vmem:[%s19 + $0x6] sm:$0x1] %vm292, %v289
    %v295 = vpack.c.bf16 %v260, %v260
    %v296 = vld [vmem:[%s7] sm:$0xf]
    %v297 = vld [vmem:[%s7 + $0x4] sm:$0xf]
    %v298 = vld [vmem:[%s7 + $0x8] sm:$0xf]
    %v299 = vld [vmem:[%s7 + $0xc] sm:$0xf]
    %v300 = vld [vmem:[%s7 + $0x10] sm:$0xf]
    %v301 = vld [vmem:[%s7 + $0x14] sm:$0xf]
    %v302 = vld [vmem:[%s7 + $0x18] sm:$0xf]
    %v303 = vld [vmem:[%s7 + $0x1c] sm:$0xf]
    %v312 = vunpack.c.l.b16 %v296
    %v313 = vunpack.c.l.b16 %v297
    %v314 = vunpack.c.l.b16 %v298
    %v315 = vunpack.c.l.b16 %v299
    %v316 = vunpack.c.l.b16 %v300
    %v317 = vunpack.c.l.b16 %v301
    %v318 = vunpack.c.l.b16 %v302
    %v319 = vunpack.c.l.b16 %v303
    %v320 = vpack.c.b16 %v313, %v312
    %v321 = vpack.c.b16 %v315, %v314
    %v322 = vpack.c.b16 %v317, %v316
    %v323 = vpack.c.b16 %v319, %v318
    %vm328 = vcmask 523264
    %v330 = vsel %vm328, %v295, 0
    %332 = vmatprep.subr.bf16.mxu0 0
    %333 = vmatpush1.bf16.msra.mxu0 %v320
    %334 = vmatprep.subr.bf16.mxu0 0
    %335 = vmatpush1.bf16.msra.mxu0 %v321
    %336 = vmatprep.subr.bf16.mxu0 0
    %337 = vmatpush1.bf16.msra.mxu0 %v322
    %338 = vmatprep.subr.bf16.mxu0 0
    %339 = vmatpush1.bf16.msra.mxu0 %v323
    %340 = vmatprep.subr.bf16.mxu0 0
    %341 = vmatpush1.bf16.msra.mxu0 0
    %342 = vmatprep.subr.bf16.mxu0 0
    %343 = vmatpush1.bf16.msra.mxu0 0
    %344 = vmatprep.subr.bf16.mxu0 0
    %345 = vmatpush1.bf16.msra.mxu0 0
    %346 = vmatprep.subr.bf16.mxu0 0
    %347 = vmatpush1.bf16.msra.mxu0 0
    %348 = vmatprep.subr.bf16.mxu0 0
    %349 = vmatpush1.bf16.msra.mxu0 0
    %350 = vmatprep.subr.bf16.mxu0 0
    %351 = vmatpush1.bf16.msra.mxu0 0
    %352 = vmatprep.subr.bf16.mxu0 0
    %353 = vmatpush1.bf16.msra.mxu0 0
    %354 = vmatprep.subr.bf16.mxu0 0
    %355 = vmatpush1.bf16.msra.mxu0 0
    %356 = vmatprep.subr.bf16.mxu0 0
    %357 = vmatpush1.bf16.msra.mxu0 0
    %358 = vmatprep.subr.bf16.mxu0 0
    %359 = vmatpush1.bf16.msra.mxu0 0
    %360 = vmatprep.subr.bf16.mxu0 0
    %361 = vmatpush1.bf16.msra.mxu0 0
    %362 = vmatprep.subr.bf16.mxu0 0
    %363 = vmatpush1.bf16.msra.mxu0 0
    %364 = vmatprep.mubr.bf16.mxu0 0
    %365 = vmatmul.mubr.bf16.gmra.mrb[0].mxu0 %v330
    %v366 = vpop.f32.mrb[0].mxu0
    %v367 = vadd.f32 0.0, %v366
    %v368 = vpop.f32.mrb[0].mxu0
    %v369 = vpop.f32.mrb[0].mxu0
    %v370 = vpop.f32.mrb[0].mxu0
    %371 = vdwg.mxu0
    %v372 = vld [vmem:[%s8] sm:$0xf]
    %v373 = vld [vmem:[%s8 + $0x4] sm:$0xf]
    %v374 = vld [vmem:[%s8 + $0x8] sm:$0xf]
    %v375 = vld [vmem:[%s8 + $0xc] sm:$0xf]
    %v376 = vld [vmem:[%s8 + $0x10] sm:$0xf]
    %v377 = vld [vmem:[%s8 + $0x14] sm:$0xf]
    %v378 = vld [vmem:[%s8 + $0x18] sm:$0xf]
    %v379 = vld [vmem:[%s8 + $0x1c] sm:$0xf]
    %v388 = vunpack.c.l.b16 %v372
    %v389 = vunpack.c.l.b16 %v373
    %v390 = vunpack.c.l.b16 %v374
    %v391 = vunpack.c.l.b16 %v375
    %v392 = vunpack.c.l.b16 %v376
    %v393 = vunpack.c.l.b16 %v377
    %v394 = vunpack.c.l.b16 %v378
    %v395 = vunpack.c.l.b16 %v379
    %v396 = vpack.c.b16 %v389, %v388
    %v397 = vpack.c.b16 %v391, %v390
    %v398 = vpack.c.b16 %v393, %v392
    %v399 = vpack.c.b16 %v395, %v394
    %404 = vmatprep.subr.bf16.mxu0 0
    %405 = vmatpush1.bf16.msra.mxu0 %v396
    %406 = vmatprep.subr.bf16.mxu0 0
    %407 = vmatpush1.bf16.msra.mxu0 %v397
    %408 = vmatprep.subr.bf16.mxu0 0
    %409 = vmatpush1.bf16.msra.mxu0 %v398
    %410 = vmatprep.subr.bf16.mxu0 0
    %411 = vmatpush1.bf16.msra.mxu0 %v399
    %412 = vmatprep.subr.bf16.mxu0 0
    %413 = vmatpush1.bf16.msra.mxu0 0
    %414 = vmatprep.subr.bf16.mxu0 0
    %415 = vmatpush1.bf16.msra.mxu0 0
    %416 = vmatprep.subr.bf16.mxu0 0
    %417 = vmatpush1.bf16.msra.mxu0 0
    %418 = vmatprep.subr.bf16.mxu0 0
    %419 = vmatpush1.bf16.msra.mxu0 0
    %420 = vmatprep.subr.bf16.mxu0 0
    %421 = vmatpush1.bf16.msra.mxu0 0
    %422 = vmatprep.subr.bf16.mxu0 0
    %423 = vmatpush1.bf16.msra.mxu0 0
    %424 = vmatprep.subr.bf16.mxu0 0
    %425 = vmatpush1.bf16.msra.mxu0 0
    %426 = vmatprep.subr.bf16.mxu0 0
    %427 = vmatpush1.bf16.msra.mxu0 0
    %428 = vmatprep.subr.bf16.mxu0 0
    %429 = vmatpush1.bf16.msra.mxu0 0
    %430 = vmatprep.subr.bf16.mxu0 0
    %431 = vmatpush1.bf16.msra.mxu0 0
    %432 = vmatprep.subr.bf16.mxu0 0
    %433 = vmatpush1.bf16.msra.mxu0 0
    %434 = vmatprep.subr.bf16.mxu0 0
    %435 = vmatpush1.bf16.msra.mxu0 0
    %436 = vmatprep.mubr.bf16.mxu0 0
    %437 = vmatmul.mubr.bf16.gmra.mrb[0].mxu0 %v330
    %v438 = vpop.f32.mrb[0].mxu0
    %v439 = vadd.f32 0.0, %v438
    %v440 = vpop.f32.mrb[0].mxu0
    %v441 = vpop.f32.mrb[0].mxu0
    %v442 = vpop.f32.mrb[0].mxu0
    %443 = vdwg.mxu0
    %v444 = vld [vmem:[%s9] sm:$0xf]
    %v445 = vld [vmem:[%s9 + $0x4] sm:$0xf]
    %v446 = vld [vmem:[%s9 + $0x8] sm:$0xf]
    %v447 = vld [vmem:[%s9 + $0xc] sm:$0xf]
    %v448 = vld [vmem:[%s9 + $0x10] sm:$0xf]
    %v449 = vld [vmem:[%s9 + $0x14] sm:$0xf]
    %v450 = vld [vmem:[%s9 + $0x18] sm:$0xf]
    %v451 = vld [vmem:[%s9 + $0x1c] sm:$0xf]
    %v460 = vunpack.c.l.b16 %v444
    %v461 = vunpack.c.l.b16 %v445
    %v462 = vunpack.c.l.b16 %v446
    %v463 = vunpack.c.l.b16 %v447
    %v464 = vunpack.c.l.b16 %v448
    %v465 = vunpack.c.l.b16 %v449
    %v466 = vunpack.c.l.b16 %v450
    %v467 = vunpack.c.l.b16 %v451
    %v468 = vpack.c.b16 %v461, %v460
    %v469 = vpack.c.b16 %v463, %v462
    %v470 = vpack.c.b16 %v465, %v464
    %v471 = vpack.c.b16 %v467, %v466
    %476 = vmatprep.subr.bf16.mxu0 0
    %477 = vmatpush1.bf16.msra.mxu0 %v468
    %478 = vmatprep.subr.bf16.mxu0 0
    %479 = vmatpush1.bf16.msra.mxu0 %v469
    %480 = vmatprep.subr.bf16.mxu0 0
    %481 = vmatpush1.bf16.msra.mxu0 %v470
    %482 = vmatprep.subr.bf16.mxu0 0
    %483 = vmatpush1.bf16.msra.mxu0 %v471
    %484 = vmatprep.subr.bf16.mxu0 0
    %485 = vmatpush1.bf16.msra.mxu0 0
    %486 = vmatprep.subr.bf16.mxu0 0
    %487 = vmatpush1.bf16.msra.mxu0 0
    %488 = vmatprep.subr.bf16.mxu0 0
    %489 = vmatpush1.bf16.msra.mxu0 0
    %490 = vmatprep.subr.bf16.mxu0 0
    %491 = vmatpush1.bf16.msra.mxu0 0
    %492 = vmatprep.subr.bf16.mxu0 0
    %493 = vmatpush1.bf16.msra.mxu0 0
    %494 = vmatprep.subr.bf16.mxu0 0
    %495 = vmatpush1.bf16.msra.mxu0 0
    %496 = vmatprep.subr.bf16.mxu0 0
    %497 = vmatpush1.bf16.msra.mxu0 0
    %498 = vmatprep.subr.bf16.mxu0 0
    %499 = vmatpush1.bf16.msra.mxu0 0
    %500 = vmatprep.subr.bf16.mxu0 0
    %501 = vmatpush1.bf16.msra.mxu0 0
    %502 = vmatprep.subr.bf16.mxu0 0
    %503 = vmatpush1.bf16.msra.mxu0 0
    %504 = vmatprep.subr.bf16.mxu0 0
    %505 = vmatpush1.bf16.msra.mxu0 0
    %506 = vmatprep.subr.bf16.mxu0 0
    %507 = vmatpush1.bf16.msra.mxu0 0
    %508 = vmatprep.mubr.bf16.mxu0 0
    %509 = vmatmul.mubr.bf16.gmra.mrb[0].mxu0 %v330
    %v510 = vpop.f32.mrb[0].mxu0
    %v511 = vadd.f32 0.0, %v510
    %v512 = vpop.f32.mrb[0].mxu0
    %v513 = vpop.f32.mrb[0].mxu0
    %v514 = vpop.f32.mrb[0].mxu0
    %515 = vdwg.mxu0
    %v516 = vpack.c.bf16 %v367, %v367
    %v517 = vld [vmem:[%s10] sm:$0x1]
    %v518 = vld [vmem:[%s11] sm:$0x1]
    %v520 = vlaneseq
    %v521 = vshrl.u32 %v520, 7
    %v522 = vsub.s32 0, %v521
    %v523 = vrot.slane %v518, %v522
    %vm525 = vcmask 15360
    %v527 = vsel %vm525, %v516, 0
    %vm529 = vcmask 1040384
    %v531 = vsel %vm529, %v517, 0
    %533 = vmatprep.subr.bf16.mxu0 0
    %534 = vmatpush1.bf16.msra.mxu0 %v531
    %535 = vmatprep.subr.bf16.mxu0 0
    %536 = vmatpush1.bf16.msra.mxu0 0
    %537 = vmatprep.subr.bf16.mxu0 0
    %538 = vmatpush1.bf16.msra.mxu0 0
    %539 = vmatprep.subr.bf16.mxu0 0
    %540 = vmatpush1.bf16.msra.mxu0 0
    %541 = vmatprep.subr.bf16.mxu0 0
    %542 = vmatpush1.bf16.msra.mxu0 0
    %543 = vmatprep.subr.bf16.mxu0 0
    %544 = vmatpush1.bf16.msra.mxu0 0
    %545 = vmatprep.subr.bf16.mxu0 0
    %546 = vmatpush1.bf16.msra.mxu0 0
    %547 = vmatprep.subr.bf16.mxu0 0
    %548 = vmatpush1.bf16.msra.mxu0 0
    %549 = vmatprep.subr.bf16.mxu0 0
    %550 = vmatpush1.bf16.msra.mxu0 0
    %551 = vmatprep.subr.bf16.mxu0 0
    %552 = vmatpush1.bf16.msra.mxu0 0
    %553 = vmatprep.subr.bf16.mxu0 0
    %554 = vmatpush1.bf16.msra.mxu0 0
    %555 = vmatprep.subr.bf16.mxu0 0
    %556 = vmatpush1.bf16.msra.mxu0 0
    %557 = vmatprep.subr.bf16.mxu0 0
    %558 = vmatpush1.bf16.msra.mxu0 0
    %559 = vmatprep.subr.bf16.mxu0 0
    %560 = vmatpush1.bf16.msra.mxu0 0
    %561 = vmatprep.subr.bf16.mxu0 0
    %562 = vmatpush1.bf16.msra.mxu0 0
    %563 = vmatprep.subr.bf16.mxu0 0
    %564 = vmatpush1.bf16.msra.mxu0 0
    %565 = vmatprep.mubr.bf16.mxu0 0
    %566 = vmatmul.mubr.bf16.gmra.mrb[0].mxu0 %v527
    %v567 = vpop.f32.mrb[0].mxu0
    %v568 = vadd.f32 %v523, %v567
    %v569 = vpop.f32.mrb[0].mxu0
    %v570 = vpop.f32.mrb[0].mxu0
    %v571 = vpop.f32.mrb[0].mxu0
    %572 = vdwg.mxu0
    %vm573 = vcmp.gt.f32.partialorder %v568, 20.0
    %v574 = vmin.f32 %v568, 20.0
    %v575 = vmul.f32 %v574, 1.442695
    %v576 = vpow.pop %v575
    %v577 = vadd.f32 %v576, 1.0
    %v578 = vlog2.pop %v577
    %v579 = vmul.f32 %v578, 0.6931472
    %v580 = vsel %vm573, %v568, %v579
    %v581 = vld [vmem:[%s12] sm:$0xff]
    %v582 = vld [vmem:[%s12 + $0x8] sm:$0xff]
    %v583 = vmul.f32 %v581, 1.442695
    %v584 = vpow.pop %v583
    %v585 = vmul.f32 %v582, 1.442695
    %v586 = vpow.pop %v585
    %v587 = vsub.f32 0.0, %v584
    %v588 = vsub.f32 0.0, %v586
    %v591 = vunpack.c.l.s4 1966171168
    %v592 = vunpack.c.0.s8 %v591
    %v593 = vlaneseq
    %v594 = vshrl.u32 %v593, 7
    %v595 = vsub.s32 %v592, %v594
    %v596 = vrot.slane %v580, %v595
    %v597 = vcombine.high %v596, %v596
    %v599 = vunpack.c.l.s4 1966171168
    %v600 = vunpack.c.0.s8 %v599
    %v601 = vlaneseq
    %v602 = vshrl.u32 %v601, 7
    %v603 = vsub.s32 %v600, %v602
    %v604 = vrot.slane %v596, %v603
    %v606 = vunpack.c.l.s4 1966171168
    %v607 = vunpack.c.0.s8 %v606
    %v608 = vlaneseq
    %v609 = vshrl.u32 %v608, 7
    %v610 = vsub.s32 %v607, %v609
    %v611 = vrot.slane %v597, %v610
    %v612 = vlaneseq
    %v613 = vshrl.u32 %v612, 7
    %v614 = vsub.s32 0, %v613
    %v615 = vrot.slane %v604, %v614
    %v616 = vlaneseq
    %v617 = vshrl.u32 %v616, 7
    %v618 = vsub.s32 0, %v617
    %v619 = vrot.slane %v611, %v618
    %v622 = vmul.f32 %v615, %v587
    %v623 = vmul.f32 %v615, %v588
    %v624 = vmul.f32 %v619, %v587
    %v625 = vmul.f32 %v619, %v588
    %v626 = vmul.f32 %v622, 1.442695
    %v627 = vpow.pop %v626
    %v628 = vmul.f32 %v623, 1.442695
    %v629 = vpow.pop %v628
    %v630 = vmul.f32 %v624, 1.442695
    %v631 = vpow.pop %v630
    %v632 = vmul.f32 %v625, 1.442695
    %v633 = vpow.pop %v632
    %v634 = vlaneseq
    %v635 = vshrl.u32 %v634, 7
    %v636 = vsub.s32 0, %v635
    %v637 = vrot.slane %v439, %v636
    %639 = vbcast.lane.b32.xlu0 %v637, 256
    %v640 = vpop.permute.xlu0 %639
    %s642 = sor.u32 256, 8
    %643 = vbcast.lane.b32.xlu0 %v637, %s642
    %v644 = vpop.permute.xlu0 %643
    %v645 = vlaneseq
    %v646 = vshrl.u32 %v645, 7
    %v647 = vsub.s32 1, %v646
    %v648 = vrot.slane %v439, %v647
    %650 = vbcast.lane.b32.xlu0 %v648, 256
    %v651 = vpop.permute.xlu0 %650
    %s653 = sor.u32 256, 8
    %654 = vbcast.lane.b32.xlu0 %v648, %s653
    %v655 = vpop.permute.xlu0 %654
    %v656 = vmul.f32 %v615, %v640
    %v657 = vmul.f32 %v615, %v644
    %v658 = vmul.f32 %v619, %v651
    %v659 = vmul.f32 %v619, %v655
    %v662 = vunpack.c.l.s4 1966171168
    %v663 = vunpack.c.0.s8 %v662
    %v664 = vlaneseq
    %v665 = vshrl.u32 %v664, 7
    %v666 = vsub.s32 %v663, %v665
    %v667 = vrot.slane %v260, %v666
    %v668 = vcombine.high %v667, %v667
    %v670 = vunpack.c.l.s4 1966171168
    %v671 = vunpack.c.0.s8 %v670
    %v672 = vlaneseq
    %v673 = vshrl.u32 %v672, 7
    %v674 = vsub.s32 %v671, %v673
    %v675 = vrot.slane %v667, %v674
    %v677 = vunpack.c.l.s4 1966171168
    %v678 = vunpack.c.0.s8 %v677
    %v679 = vlaneseq
    %v680 = vshrl.u32 %v679, 7
    %v681 = vsub.s32 %v678, %v680
    %v682 = vrot.slane %v668, %v681
    %v683 = vlaneseq
    %v684 = vshrl.u32 %v683, 7
    %v685 = vsub.s32 0, %v684
    %v686 = vrot.slane %v675, %v685
    %v687 = vlaneseq
    %v688 = vshrl.u32 %v687, 7
    %v689 = vsub.s32 0, %v688
    %v690 = vrot.slane %v682, %v689
    %v693 = vmul.f32 %v656, %v686
    %v694 = vmul.f32 %v657, %v686
    %v695 = vmul.f32 %v658, %v690
    %v696 = vmul.f32 %v659, %v690
    %v697 = vld [vmem:[%s14] sm:$0xff]
    %v698 = vld [vmem:[%s14 + $0x8] sm:$0xff]
    %v699 = vld [vmem:[%s14 + $0x10] sm:$0xff]
    %v700 = vld [vmem:[%s14 + $0x18] sm:$0xff]
    %v701 = vmul.f32 %v697, %v627
    %v702 = vmul.f32 %v698, %v629
    %v703 = vmul.f32 %v699, %v631
    %v704 = vmul.f32 %v700, %v633
    %v705 = vadd.f32 %v701, %v693
    %v706 = vadd.f32 %v702, %v694
    %v707 = vadd.f32 %v703, %v695
    %v708 = vadd.f32 %v704, %v696
    %709 = vst.msk [vmem:[%s20] sm:$0xff] %vm328, %v705
    %710 = vst.msk [vmem:[%s20 + $0x8] sm:$0xff] %vm328, %v706
    %711 = vst.msk [vmem:[%s20 + $0x10] sm:$0xff] %vm328, %v707
    %712 = vst.msk [vmem:[%s20 + $0x18] sm:$0xff] %vm328, %v708
    %v713 = vlaneseq
    %v714 = vshrl.u32 %v713, 7
    %v715 = vsub.s32 0, %v714
    %v716 = vrot.slane %v511, %v715
    %718 = vbcast.lane.b32.xlu0 %v716, 256
    %v719 = vpop.permute.xlu0 %718
    %s721 = sor.u32 256, 8
    %722 = vbcast.lane.b32.xlu0 %v716, %s721
    %v723 = vpop.permute.xlu0 %722
    %v724 = vlaneseq
    %v725 = vshrl.u32 %v724, 7
    %v726 = vsub.s32 1, %v725
    %v727 = vrot.slane %v511, %v726
    %729 = vbcast.lane.b32.xlu0 %v727, 256
    %v730 = vpop.permute.xlu0 %729
    %s732 = sor.u32 256, 8
    %733 = vbcast.lane.b32.xlu0 %v727, %s732
    %v734 = vpop.permute.xlu0 %733
    %v735 = vmul.f32 %v705, %v719
    %v736 = vmul.f32 %v706, %v723
    %v737 = vmul.f32 %v707, %v730
    %v738 = vmul.f32 %v708, %v734
    %v739 = vsel %vm328, %v735, 0.0
    %v740 = vsel %vm328, %v736, 0.0
    %v741 = vadd.f32 %v739, %v740
    %v742 = vrot.slane %v741, 4
    %v743 = vadd.f32 %v741, %v742
    %v744 = vrot.slane %v743, 2
    %v745 = vadd.f32 %v743, %v744
    %v746 = vrot.slane %v745, 1
    %v747 = vadd.f32 %v745, %v746
    %v748 = vsel %vm328, %v737, 0.0
    %v749 = vsel %vm328, %v738, 0.0
    %v750 = vadd.f32 %v748, %v749
    %v751 = vrot.slane %v750, 4
    %v752 = vadd.f32 %v750, %v751
    %v753 = vrot.slane %v752, 2
    %v754 = vadd.f32 %v752, %v753
    %v755 = vrot.slane %v754, 1
    %v756 = vadd.f32 %v754, %v755
    %v757 = vld [vmem:[%s13] sm:$0x1]
    %v759 = vlaneseq
    %v760 = vshrl.u32 %v759, 7
    %v761 = vsub.s32 0, %v760
    %v762 = vrot.slane %v757, %v761
    %v764 = vmul.f32 %v762, %v260
    %v766 = vrot.slane %v764, 1
    %v769 = vadd.f32 %v747, %v764
    %v770 = vadd.f32 %v756, %v766
    %v771 = vsub.f32 0.0, %v195
    %v772 = vmul.f32 %v771, 1.442695
    %v773 = vpow.pop %v772
    %v774 = vadd.f32 %v773, 1.0
    %v775 = vrcp.pop %v774
    %v776 = vmul.f32 1.0, %v775
    %v777 = vmul.f32 %v195, %v776
    %v779 = vrot.slane %v777, 1
    %v782 = vmul.f32 %v769, %v777
    %v783 = vmul.f32 %v770, %v779
    %v784 = vpack.c.bf16 %v782, %v782
    %v785 = vpack.c.bf16 %v783, %v783
    %v786 = vld [vmem:[%s15] sm:$0xf]
    %v787 = vld [vmem:[%s15 + $0x4] sm:$0xf]
    %v788 = vld [vmem:[%s15 + $0x8] sm:$0xf]
    %v789 = vld [vmem:[%s15 + $0xc] sm:$0xf]
    %v790 = vld [vmem:[%s15 + $0x10] sm:$0xf]
    %v791 = vld [vmem:[%s15 + $0x14] sm:$0xf]
    %v792 = vld [vmem:[%s15 + $0x18] sm:$0xf]
    %v793 = vld [vmem:[%s15 + $0x1c] sm:$0xf]
    %v796 = vunpack.c.l.b16 %v784
    %v797 = vunpack.c.l.b16 %v785
    %v798 = vrot.slane %v797, 7
    %v799 = vsel %vm225, %v798, %v796
    %v800 = vpack.c.b16 %v799, %v799
    %v809 = vunpack.c.l.b16 %v786
    %v810 = vunpack.c.l.b16 %v787
    %v811 = vunpack.c.l.b16 %v788
    %v812 = vunpack.c.l.b16 %v789
    %v813 = vunpack.c.l.b16 %v790
    %v814 = vunpack.c.l.b16 %v791
    %v815 = vunpack.c.l.b16 %v792
    %v816 = vunpack.c.l.b16 %v793
    %v817 = vpack.c.b16 %v810, %v809
    %v818 = vpack.c.b16 %v812, %v811
    %v819 = vpack.c.b16 %v814, %v813
    %v820 = vpack.c.b16 %v816, %v815
    %v826 = vsel %vm328, %v800, 0
    %828 = vmatprep.subr.bf16.mxu0 0
    %829 = vmatpush1.bf16.msra.mxu0 %v817
    %830 = vmatprep.subr.bf16.mxu0 0
    %831 = vmatpush1.bf16.msra.mxu0 %v818
    %832 = vmatprep.subr.bf16.mxu0 0
    %833 = vmatpush1.bf16.msra.mxu0 %v819
    %834 = vmatprep.subr.bf16.mxu0 0
    %835 = vmatpush1.bf16.msra.mxu0 %v820
    %836 = vmatprep.subr.bf16.mxu0 0
    %837 = vmatpush1.bf16.msra.mxu0 0
    %838 = vmatprep.subr.bf16.mxu0 0
    %839 = vmatpush1.bf16.msra.mxu0 0
    %840 = vmatprep.subr.bf16.mxu0 0
    %841 = vmatpush1.bf16.msra.mxu0 0
    %842 = vmatprep.subr.bf16.mxu0 0
    %843 = vmatpush1.bf16.msra.mxu0 0
    %844 = vmatprep.subr.bf16.mxu0 0
    %845 = vmatpush1.bf16.msra.mxu0 0
    %846 = vmatprep.subr.bf16.mxu0 0
    %847 = vmatpush1.bf16.msra.mxu0 0
    %848 = vmatprep.subr.bf16.mxu0 0
    %849 = vmatpush1.bf16.msra.mxu0 0
    %850 = vmatprep.subr.bf16.mxu0 0
    %851 = vmatpush1.bf16.msra.mxu0 0
    %852 = vmatprep.subr.bf16.mxu0 0
    %853 = vmatpush1.bf16.msra.mxu0 0
    %854 = vmatprep.subr.bf16.mxu0 0
    %855 = vmatpush1.bf16.msra.mxu0 0
    %856 = vmatprep.subr.bf16.mxu0 0
    %857 = vmatpush1.bf16.msra.mxu0 0
    %858 = vmatprep.subr.bf16.mxu0 0
    %859 = vmatpush1.bf16.msra.mxu0 0
    %860 = vmatprep.mubr.bf16.mxu0 0
    %861 = vmatmul.mubr.bf16.gmra.mrb[0].mxu0 %v826
    %v862 = vpop.f32.mrb[0].mxu0
    %v863 = vadd.f32 0.0, %v862
    %v864 = vpop.f32.mrb[0].mxu0
    %v865 = vpop.f32.mrb[0].mxu0
    %v866 = vpop.f32.mrb[0].mxu0
    %867 = vdwg.mxu0
    %v868 = vadd.f32 %v64, %v863
    %v869 = vmul.f32 %v868, %v868
    %v870 = vsel %vm66, %v869, 0.0
    %871 = vadd.xlane.f32.xlu0 %v870
    %v872 = vpop.xlane.xlu0 %871
    %v873 = vmul.f32 %v872, %v70
    %v874 = vadd.f32 %v873, 1e-05
    %v875 = vrsqrt.pop %v874
    %v876 = vmul.f32 %v868, %v875
    %s877 = scalar_lea.vmem %s1, 1
    %v878 = vld [vmem:[%s877] sm:$0x1]
    %v880 = vlaneseq
    %v881 = vshrl.u32 %v880, 7
    %v882 = vsub.s32 0, %v881
    %v883 = vrot.slane %v878, %v882
    %v885 = vmul.f32 %v876, %v883
    %v886 = vpack.c.bf16 %v885, %v885
    %s887 = scalar_lea.vmem %s2, 16
    %v888 = vld [vmem:[%s887] sm:$0xf]
    %v889 = vld [vmem:[%s887 + $0x4] sm:$0xf]
    %v890 = vld [vmem:[%s887 + $0x8] sm:$0xf]
    %v891 = vld [vmem:[%s887 + $0xc] sm:$0xf]
    %v896 = vunpack.c.l.b16 %v888
    %v897 = vunpack.c.l.b16 %v889
    %v898 = vunpack.c.l.b16 %v890
    %v899 = vunpack.c.l.b16 %v891
    %v900 = vpack.c.b16 %v897, %v896
    %v901 = vpack.c.b16 %v899, %v898
    %v905 = vsel %vm100, %v886, 0
    %907 = vmatprep.subr.bf16.mxu0 0
    %908 = vmatpush1.bf16.msra.mxu0 %v900
    %909 = vmatprep.subr.bf16.mxu0 0
    %910 = vmatpush1.bf16.msra.mxu0 %v901
    %911 = vmatprep.subr.bf16.mxu0 0
    %912 = vmatpush1.bf16.msra.mxu0 0
    %913 = vmatprep.subr.bf16.mxu0 0
    %914 = vmatpush1.bf16.msra.mxu0 0
    %915 = vmatprep.subr.bf16.mxu0 0
    %916 = vmatpush1.bf16.msra.mxu0 0
    %917 = vmatprep.subr.bf16.mxu0 0
    %918 = vmatpush1.bf16.msra.mxu0 0
    %919 = vmatprep.subr.bf16.mxu0 0
    %920 = vmatpush1.bf16.msra.mxu0 0
    %921 = vmatprep.subr.bf16.mxu0 0
    %922 = vmatpush1.bf16.msra.mxu0 0
    %923 = vmatprep.subr.bf16.mxu0 0
    %924 = vmatpush1.bf16.msra.mxu0 0
    %925 = vmatprep.subr.bf16.mxu0 0
    %926 = vmatpush1.bf16.msra.mxu0 0
    %927 = vmatprep.subr.bf16.mxu0 0
    %928 = vmatpush1.bf16.msra.mxu0 0
    %929 = vmatprep.subr.bf16.mxu0 0
    %930 = vmatpush1.bf16.msra.mxu0 0
    %931 = vmatprep.subr.bf16.mxu0 0
    %932 = vmatpush1.bf16.msra.mxu0 0
    %933 = vmatprep.subr.bf16.mxu0 0
    %934 = vmatpush1.bf16.msra.mxu0 0
    %935 = vmatprep.subr.bf16.mxu0 0
    %936 = vmatpush1.bf16.msra.mxu0 0
    %937 = vmatprep.subr.bf16.mxu0 0
    %938 = vmatpush1.bf16.msra.mxu0 0
    %939 = vmatprep.mubr.bf16.mxu0 0
    %940 = vmatmul.mubr.bf16.gmra.mrb[0].mxu0 %v905
    %v941 = vpop.f32.mrb[0].mxu0
    %v942 = vadd.f32 0.0, %v941
    %v943 = vpop.f32.mrb[0].mxu0
    %v944 = vpop.f32.mrb[0].mxu0
    %v945 = vpop.f32.mrb[0].mxu0
    %946 = vdwg.mxu0
    %s947 = scalar_lea.vmem %s3, 16
    %v948 = vld [vmem:[%s947] sm:$0xf]
    %v949 = vld [vmem:[%s947 + $0x4] sm:$0xf]
    %v950 = vld [vmem:[%s947 + $0x8] sm:$0xf]
    %v951 = vld [vmem:[%s947 + $0xc] sm:$0xf]
    %v956 = vunpack.c.l.b16 %v948
    %v957 = vunpack.c.l.b16 %v949
    %v958 = vunpack.c.l.b16 %v950
    %v959 = vunpack.c.l.b16 %v951
    %v960 = vpack.c.b16 %v957, %v956
    %v961 = vpack.c.b16 %v959, %v958
    %964 = vmatprep.subr.bf16.mxu0 0
    %965 = vmatpush1.bf16.msra.mxu0 %v960
    %966 = vmatprep.subr.bf16.mxu0 0
    %967 = vmatpush1.bf16.msra.mxu0 %v961
    %968 = vmatprep.subr.bf16.mxu0 0
    %969 = vmatpush1.bf16.msra.mxu0 0
    %970 = vmatprep.subr.bf16.mxu0 0
    %971 = vmatpush1.bf16.msra.mxu0 0
    %972 = vmatprep.subr.bf16.mxu0 0
    %973 = vmatpush1.bf16.msra.mxu0 0
    %974 = vmatprep.subr.bf16.mxu0 0
    %975 = vmatpush1.bf16.msra.mxu0 0
    %976 = vmatprep.subr.bf16.mxu0 0
    %977 = vmatpush1.bf16.msra.mxu0 0
    %978 = vmatprep.subr.bf16.mxu0 0
    %979 = vmatpush1.bf16.msra.mxu0 0
    %980 = vmatprep.subr.bf16.mxu0 0
    %981 = vmatpush1.bf16.msra.mxu0 0
    %982 = vmatprep.subr.bf16.mxu0 0
    %983 = vmatpush1.bf16.msra.mxu0 0
    %984 = vmatprep.subr.bf16.mxu0 0
    %985 = vmatpush1.bf16.msra.mxu0 0
    %986 = vmatprep.subr.bf16.mxu0 0
    %987 = vmatpush1.bf16.msra.mxu0 0
    %988 = vmatprep.subr.bf16.mxu0 0
    %989 = vmatpush1.bf16.msra.mxu0 0
    %990 = vmatprep.subr.bf16.mxu0 0
    %991 = vmatpush1.bf16.msra.mxu0 0
    %992 = vmatprep.subr.bf16.mxu0 0
    %993 = vmatpush1.bf16.msra.mxu0 0
    %994 = vmatprep.subr.bf16.mxu0 0
    %995 = vmatpush1.bf16.msra.mxu0 0
    %996 = vmatprep.mubr.bf16.mxu0 0
    %997 = vmatmul.mubr.bf16.gmra.mrb[0].mxu0 %v905
    %v998 = vpop.f32.mrb[0].mxu0
    %v999 = vadd.f32 0.0, %v998
    %v1000 = vpop.f32.mrb[0].mxu0
    %v1001 = vpop.f32.mrb[0].mxu0
    %v1002 = vpop.f32.mrb[0].mxu0
    %1003 = vdwg.mxu0
    %s1004 = scalar_lea.vmem %s4, 4
    %v1005 = vld [vmem:[%s1004] sm:$0xf]
    %s1006 = scalar_lea.vmem %s6, 8
    %v1007 = vld [vmem:[%s1006] sm:$0x7]
    %v1008 = vld [vmem:[%s1006 + $0x4] sm:$0x7]
    %v1009 = vlaneseq
    %v1010 = vshrl.u32 %v1009, 7
    %v1011 = vsub.s32 3, %v1010
    %v1012 = vrot.slane %v1005, %v1011
    %v1013 = vmul.f32 %v942, %v1012
    %s1014 = scalar_lea.vmem %s5, 1
    %v1015 = vld [vmem:[%s1014] sm:$0x1]
    %v1017 = vlaneseq
    %v1018 = vshrl.u32 %v1017, 7
    %v1019 = vsub.s32 0, %v1018
    %v1020 = vrot.slane %v1015, %v1019
    %v1022 = vadd.f32 %v1013, %v1020
    %v1023 = vlaneseq
    %v1024 = vshrl.u32 %v1023, 7
    %v1025 = vsub.s32 0, %v1024
    %v1026 = vrot.slane %v1005, %v1025
    %v1027 = vmul.f32 %v1007, %v1026
    %v1028 = vmul.f32 %v1008, %v1026
    %v1031 = vrot.slane %v1028, 7
    %v1032 = vsel %vm225, %v1031, %v1027
    %v1034 = vadd.f32 %v1022, %v1032
    %v1035 = vlaneseq
    %v1036 = vshrl.u32 %v1035, 7
    %v1037 = vsub.s32 1, %v1036
    %v1038 = vrot.slane %v1005, %v1037
    %v1039 = vmul.f32 %v1007, %v1038
    %v1040 = vmul.f32 %v1008, %v1038
    %v1043 = vrot.slane %v1039, 1
    %v1044 = vsel %vm225, %v1040, %v1043
    %v1046 = vadd.f32 %v1034, %v1044
    %v1047 = vlaneseq
    %v1048 = vshrl.u32 %v1047, 7
    %v1049 = vsub.s32 2, %v1048
    %v1050 = vrot.slane %v1005, %v1049
    %v1051 = vmul.f32 %v1007, %v1050
    %v1052 = vmul.f32 %v1008, %v1050
    %v1055 = vrot.slane %v1051, 2
    %v1056 = vrot.slane %v1052, 1
    %v1057 = vsel %vm225, %v1056, %v1055
    %v1059 = vadd.f32 %v1046, %v1057
    %v1060 = vsub.f32 0.0, %v1059
    %v1061 = vmul.f32 %v1060, 1.442695
    %v1062 = vpow.pop %v1061
    %v1063 = vadd.f32 %v1062, 1.0
    %v1064 = vrcp.pop %v1063
    %v1065 = vmul.f32 1.0, %v1064
    %v1066 = vmul.f32 %v1059, %v1065
    %s1067 = scalar_lea.vmem %s19, 8
    %1068 = vst.msk [vmem:[%s1067 - $0x1] sm:$0x2] %vm261, %v1007
    %1069 = vst.msk [vmem:[%s1067 + $0x3] sm:$0x2] %vm261, %v1008
    %1070 = vst.msk [vmem:[%s1067 - $0x1] sm:$0x4] %vm264, %v1007
    %1071 = vst.msk [vmem:[%s1067 + $0x3] sm:$0x4] %vm264, %v1008
    %v1074 = vunpack.c.l.s4 1966171168
    %v1075 = vunpack.c.0.s8 %v1074
    %v1076 = vlaneseq
    %v1077 = vshrl.u32 %v1076, 7
    %v1078 = vsub.s32 %v1075, %v1077
    %v1079 = vrot.slane %v942, %v1078
    %v1080 = vcombine.high %v1079, %v1079
    %v1082 = vunpack.c.l.s4 1966171168
    %v1083 = vunpack.c.0.s8 %v1082
    %v1084 = vlaneseq
    %v1085 = vshrl.u32 %v1084, 7
    %v1086 = vsub.s32 %v1083, %v1085
    %v1087 = vrot.slane %v1079, %v1086
    %v1089 = vunpack.c.l.s4 1966171168
    %v1090 = vunpack.c.0.s8 %v1089
    %v1091 = vlaneseq
    %v1092 = vshrl.u32 %v1091, 7
    %v1093 = vsub.s32 %v1090, %v1092
    %v1094 = vrot.slane %v1080, %v1093
    %1097 = vst.msk [vmem:[%s1067 + $0x2] sm:$0x1] %vm292, %v1087
    %1098 = vst.msk [vmem:[%s1067 + $0x6] sm:$0x1] %vm292, %v1094
    %v1099 = vpack.c.bf16 %v1066, %v1066
    %s1100 = scalar_lea.vmem %s7, 32
    %v1101 = vld [vmem:[%s1100] sm:$0xf]
    %v1102 = vld [vmem:[%s1100 + $0x4] sm:$0xf]
    %v1103 = vld [vmem:[%s1100 + $0x8] sm:$0xf]
    %v1104 = vld [vmem:[%s1100 + $0xc] sm:$0xf]
    %v1105 = vld [vmem:[%s1100 + $0x10] sm:$0xf]
    %v1106 = vld [vmem:[%s1100 + $0x14] sm:$0xf]
    %v1107 = vld [vmem:[%s1100 + $0x18] sm:$0xf]
    %v1108 = vld [vmem:[%s1100 + $0x1c] sm:$0xf]
    %v1117 = vunpack.c.l.b16 %v1101
    %v1118 = vunpack.c.l.b16 %v1102
    %v1119 = vunpack.c.l.b16 %v1103
    %v1120 = vunpack.c.l.b16 %v1104
    %v1121 = vunpack.c.l.b16 %v1105
    %v1122 = vunpack.c.l.b16 %v1106
    %v1123 = vunpack.c.l.b16 %v1107
    %v1124 = vunpack.c.l.b16 %v1108
    %v1125 = vpack.c.b16 %v1118, %v1117
    %v1126 = vpack.c.b16 %v1120, %v1119
    %v1127 = vpack.c.b16 %v1122, %v1121
    %v1128 = vpack.c.b16 %v1124, %v1123
    %v1134 = vsel %vm328, %v1099, 0
    %1136 = vmatprep.subr.bf16.mxu0 0
    %1137 = vmatpush1.bf16.msra.mxu0 %v1125
    %1138 = vmatprep.subr.bf16.mxu0 0
    %1139 = vmatpush1.bf16.msra.mxu0 %v1126
    %1140 = vmatprep.subr.bf16.mxu0 0
    %1141 = vmatpush1.bf16.msra.mxu0 %v1127
    %1142 = vmatprep.subr.bf16.mxu0 0
    %1143 = vmatpush1.bf16.msra.mxu0 %v1128
    %1144 = vmatprep.subr.bf16.mxu0 0
    %1145 = vmatpush1.bf16.msra.mxu0 0
    %1146 = vmatprep.subr.bf16.mxu0 0
    %1147 = vmatpush1.bf16.msra.mxu0 0
    %1148 = vmatprep.subr.bf16.mxu0 0
    %1149 = vmatpush1.bf16.msra.mxu0 0
    %1150 = vmatprep.subr.bf16.mxu0 0
    %1151 = vmatpush1.bf16.msra.mxu0 0
    %1152 = vmatprep.subr.bf16.mxu0 0
    %1153 = vmatpush1.bf16.msra.mxu0 0
    %1154 = vmatprep.subr.bf16.mxu0 0
    %1155 = vmatpush1.bf16.msra.mxu0 0
    %1156 = vmatprep.subr.bf16.mxu0 0
    %1157 = vmatpush1.bf16.msra.mxu0 0
    %1158 = vmatprep.subr.bf16.mxu0 0
    %1159 = vmatpush1.bf16.msra.mxu0 0
    %1160 = vmatprep.subr.bf16.mxu0 0
    %1161 = vmatpush1.bf16.msra.mxu0 0
    %1162 = vmatprep.subr.bf16.mxu0 0
    %1163 = vmatpush1.bf16.msra.mxu0 0
    %1164 = vmatprep.subr.bf16.mxu0 0
    %1165 = vmatpush1.bf16.msra.mxu0 0
    %1166 = vmatprep.subr.bf16.mxu0 0
    %1167 = vmatpush1.bf16.msra.mxu0 0
    %1168 = vmatprep.mubr.bf16.mxu0 0
    %1169 = vmatmul.mubr.bf16.gmra.mrb[0].mxu0 %v1134
    %v1170 = vpop.f32.mrb[0].mxu0
    %v1171 = vadd.f32 0.0, %v1170
    %v1172 = vpop.f32.mrb[0].mxu0
    %v1173 = vpop.f32.mrb[0].mxu0
    %v1174 = vpop.f32.mrb[0].mxu0
    %1175 = vdwg.mxu0
    %s1176 = scalar_lea.vmem %s8, 32
    %v1177 = vld [vmem:[%s1176] sm:$0xf]
    %v1178 = vld [vmem:[%s1176 + $0x4] sm:$0xf]
    %v1179 = vld [vmem:[%s1176 + $0x8] sm:$0xf]
    %v1180 = vld [vmem:[%s1176 + $0xc] sm:$0xf]
    %v1181 = vld [vmem:[%s1176 + $0x10] sm:$0xf]
    %v1182 = vld [vmem:[%s1176 + $0x14] sm:$0xf]
    %v1183 = vld [vmem:[%s1176 + $0x18] sm:$0xf]
    %v1184 = vld [vmem:[%s1176 + $0x1c] sm:$0xf]
    %v1193 = vunpack.c.l.b16 %v1177
    %v1194 = vunpack.c.l.b16 %v1178
    %v1195 = vunpack.c.l.b16 %v1179
    %v1196 = vunpack.c.l.b16 %v1180
    %v1197 = vunpack.c.l.b16 %v1181
    %v1198 = vunpack.c.l.b16 %v1182
    %v1199 = vunpack.c.l.b16 %v1183
    %v1200 = vunpack.c.l.b16 %v1184
    %v1201 = vpack.c.b16 %v1194, %v1193
    %v1202 = vpack.c.b16 %v1196, %v1195
    %v1203 = vpack.c.b16 %v1198, %v1197
    %v1204 = vpack.c.b16 %v1200, %v1199
    %1209 = vmatprep.subr.bf16.mxu0 0
    %1210 = vmatpush1.bf16.msra.mxu0 %v1201
    %1211 = vmatprep.subr.bf16.mxu0 0
    %1212 = vmatpush1.bf16.msra.mxu0 %v1202
    %1213 = vmatprep.subr.bf16.mxu0 0
    %1214 = vmatpush1.bf16.msra.mxu0 %v1203
    %1215 = vmatprep.subr.bf16.mxu0 0
    %1216 = vmatpush1.bf16.msra.mxu0 %v1204
    %1217 = vmatprep.subr.bf16.mxu0 0
    %1218 = vmatpush1.bf16.msra.mxu0 0
    %1219 = vmatprep.subr.bf16.mxu0 0
    %1220 = vmatpush1.bf16.msra.mxu0 0
    %1221 = vmatprep.subr.bf16.mxu0 0
    %1222 = vmatpush1.bf16.msra.mxu0 0
    %1223 = vmatprep.subr.bf16.mxu0 0
    %1224 = vmatpush1.bf16.msra.mxu0 0
    %1225 = vmatprep.subr.bf16.mxu0 0
    %1226 = vmatpush1.bf16.msra.mxu0 0
    %1227 = vmatprep.subr.bf16.mxu0 0
    %1228 = vmatpush1.bf16.msra.mxu0 0
    %1229 = vmatprep.subr.bf16.mxu0 0
    %1230 = vmatpush1.bf16.msra.mxu0 0
    %1231 = vmatprep.subr.bf16.mxu0 0
    %1232 = vmatpush1.bf16.msra.mxu0 0
    %1233 = vmatprep.subr.bf16.mxu0 0
    %1234 = vmatpush1.bf16.msra.mxu0 0
    %1235 = vmatprep.subr.bf16.mxu0 0
    %1236 = vmatpush1.bf16.msra.mxu0 0
    %1237 = vmatprep.subr.bf16.mxu0 0
    %1238 = vmatpush1.bf16.msra.mxu0 0
    %1239 = vmatprep.subr.bf16.mxu0 0
    %1240 = vmatpush1.bf16.msra.mxu0 0
    %1241 = vmatprep.mubr.bf16.mxu0 0
    %1242 = vmatmul.mubr.bf16.gmra.mrb[0].mxu0 %v1134
    %v1243 = vpop.f32.mrb[0].mxu0
    %v1244 = vadd.f32 0.0, %v1243
    %v1245 = vpop.f32.mrb[0].mxu0
    %v1246 = vpop.f32.mrb[0].mxu0
    %v1247 = vpop.f32.mrb[0].mxu0
    %1248 = vdwg.mxu0
    %s1249 = scalar_lea.vmem %s9, 32
    %v1250 = vld [vmem:[%s1249] sm:$0xf]
    %v1251 = vld [vmem:[%s1249 + $0x4] sm:$0xf]
    %v1252 = vld [vmem:[%s1249 + $0x8] sm:$0xf]
    %v1253 = vld [vmem:[%s1249 + $0xc] sm:$0xf]
    %v1254 = vld [vmem:[%s1249 + $0x10] sm:$0xf]
    %v1255 = vld [vmem:[%s1249 + $0x14] sm:$0xf]
    %v1256 = vld [vmem:[%s1249 + $0x18] sm:$0xf]
    %v1257 = vld [vmem:[%s1249 + $0x1c] sm:$0xf]
    %v1266 = vunpack.c.l.b16 %v1250
    %v1267 = vunpack.c.l.b16 %v1251
    %v1268 = vunpack.c.l.b16 %v1252
    %v1269 = vunpack.c.l.b16 %v1253
    %v1270 = vunpack.c.l.b16 %v1254
    %v1271 = vunpack.c.l.b16 %v1255
    %v1272 = vunpack.c.l.b16 %v1256
    %v1273 = vunpack.c.l.b16 %v1257
    %v1274 = vpack.c.b16 %v1267, %v1266
    %v1275 = vpack.c.b16 %v1269, %v1268
    %v1276 = vpack.c.b16 %v1271, %v1270
    %v1277 = vpack.c.b16 %v1273, %v1272
    %1282 = vmatprep.subr.bf16.mxu0 0
    %1283 = vmatpush1.bf16.msra.mxu0 %v1274
    %1284 = vmatprep.subr.bf16.mxu0 0
    %1285 = vmatpush1.bf16.msra.mxu0 %v1275
    %1286 = vmatprep.subr.bf16.mxu0 0
    %1287 = vmatpush1.bf16.msra.mxu0 %v1276
    %1288 = vmatprep.subr.bf16.mxu0 0
    %1289 = vmatpush1.bf16.msra.mxu0 %v1277
    %1290 = vmatprep.subr.bf16.mxu0 0
    %1291 = vmatpush1.bf16.msra.mxu0 0
    %1292 = vmatprep.subr.bf16.mxu0 0
    %1293 = vmatpush1.bf16.msra.mxu0 0
    %1294 = vmatprep.subr.bf16.mxu0 0
    %1295 = vmatpush1.bf16.msra.mxu0 0
    %1296 = vmatprep.subr.bf16.mxu0 0
    %1297 = vmatpush1.bf16.msra.mxu0 0
    %1298 = vmatprep.subr.bf16.mxu0 0
    %1299 = vmatpush1.bf16.msra.mxu0 0
    %1300 = vmatprep.subr.bf16.mxu0 0
    %1301 = vmatpush1.bf16.msra.mxu0 0
    %1302 = vmatprep.subr.bf16.mxu0 0
    %1303 = vmatpush1.bf16.msra.mxu0 0
    %1304 = vmatprep.subr.bf16.mxu0 0
    %1305 = vmatpush1.bf16.msra.mxu0 0
    %1306 = vmatprep.subr.bf16.mxu0 0
    %1307 = vmatpush1.bf16.msra.mxu0 0
    %1308 = vmatprep.subr.bf16.mxu0 0
    %1309 = vmatpush1.bf16.msra.mxu0 0
    %1310 = vmatprep.subr.bf16.mxu0 0
    %1311 = vmatpush1.bf16.msra.mxu0 0
    %1312 = vmatprep.subr.bf16.mxu0 0
    %1313 = vmatpush1.bf16.msra.mxu0 0
    %1314 = vmatprep.mubr.bf16.mxu0 0
    %1315 = vmatmul.mubr.bf16.gmra.mrb[0].mxu0 %v1134
    %v1316 = vpop.f32.mrb[0].mxu0
    %v1317 = vadd.f32 0.0, %v1316
    %v1318 = vpop.f32.mrb[0].mxu0
    %v1319 = vpop.f32.mrb[0].mxu0
    %v1320 = vpop.f32.mrb[0].mxu0
    %1321 = vdwg.mxu0
    %v1322 = vpack.c.bf16 %v1171, %v1171
    %s1323 = scalar_lea.vmem %s10, 1
    %v1324 = vld [vmem:[%s1323] sm:$0x1]
    %s1325 = scalar_lea.vmem %s11, 1
    %v1326 = vld [vmem:[%s1325] sm:$0x1]
    %v1328 = vlaneseq
    %v1329 = vshrl.u32 %v1328, 7
    %v1330 = vsub.s32 0, %v1329
    %v1331 = vrot.slane %v1326, %v1330
    %v1334 = vsel %vm525, %v1322, 0
    %v1337 = vsel %vm529, %v1324, 0
    %1339 = vmatprep.subr.bf16.mxu0 0
    %1340 = vmatpush1.bf16.msra.mxu0 %v1337
    %1341 = vmatprep.subr.bf16.mxu0 0
    %1342 = vmatpush1.bf16.msra.mxu0 0
    %1343 = vmatprep.subr.bf16.mxu0 0
    %1344 = vmatpush1.bf16.msra.mxu0 0
    %1345 = vmatprep.subr.bf16.mxu0 0
    %1346 = vmatpush1.bf16.msra.mxu0 0
    %1347 = vmatprep.subr.bf16.mxu0 0
    %1348 = vmatpush1.bf16.msra.mxu0 0
    %1349 = vmatprep.subr.bf16.mxu0 0
    %1350 = vmatpush1.bf16.msra.mxu0 0
    %1351 = vmatprep.subr.bf16.mxu0 0
    %1352 = vmatpush1.bf16.msra.mxu0 0
    %1353 = vmatprep.subr.bf16.mxu0 0
    %1354 = vmatpush1.bf16.msra.mxu0 0
    %1355 = vmatprep.subr.bf16.mxu0 0
    %1356 = vmatpush1.bf16.msra.mxu0 0
    %1357 = vmatprep.subr.bf16.mxu0 0
    %1358 = vmatpush1.bf16.msra.mxu0 0
    %1359 = vmatprep.subr.bf16.mxu0 0
    %1360 = vmatpush1.bf16.msra.mxu0 0
    %1361 = vmatprep.subr.bf16.mxu0 0
    %1362 = vmatpush1.bf16.msra.mxu0 0
    %1363 = vmatprep.subr.bf16.mxu0 0
    %1364 = vmatpush1.bf16.msra.mxu0 0
    %1365 = vmatprep.subr.bf16.mxu0 0
    %1366 = vmatpush1.bf16.msra.mxu0 0
    %1367 = vmatprep.subr.bf16.mxu0 0
    %1368 = vmatpush1.bf16.msra.mxu0 0
    %1369 = vmatprep.subr.bf16.mxu0 0
    %1370 = vmatpush1.bf16.msra.mxu0 0
    %1371 = vmatprep.mubr.bf16.mxu0 0
    %1372 = vmatmul.mubr.bf16.gmra.mrb[0].mxu0 %v1334
    %v1373 = vpop.f32.mrb[0].mxu0
    %v1374 = vadd.f32 %v1331, %v1373
    %v1375 = vpop.f32.mrb[0].mxu0
    %v1376 = vpop.f32.mrb[0].mxu0
    %v1377 = vpop.f32.mrb[0].mxu0
    %1378 = vdwg.mxu0
    %vm1379 = vcmp.gt.f32.partialorder %v1374, 20.0
    %v1380 = vmin.f32 %v1374, 20.0
    %v1381 = vmul.f32 %v1380, 1.442695
    %v1382 = vpow.pop %v1381
    %v1383 = vadd.f32 %v1382, 1.0
    %v1384 = vlog2.pop %v1383
    %v1385 = vmul.f32 %v1384, 0.6931472
    %v1386 = vsel %vm1379, %v1374, %v1385
    %s1387 = scalar_lea.vmem %s12, 16
    %v1388 = vld [vmem:[%s1387] sm:$0xff]
    %v1389 = vld [vmem:[%s1387 + $0x8] sm:$0xff]
    %v1390 = vmul.f32 %v1388, 1.442695
    %v1391 = vpow.pop %v1390
    %v1392 = vmul.f32 %v1389, 1.442695
    %v1393 = vpow.pop %v1392
    %v1394 = vsub.f32 0.0, %v1391
    %v1395 = vsub.f32 0.0, %v1393
    %v1398 = vunpack.c.l.s4 1966171168
    %v1399 = vunpack.c.0.s8 %v1398
    %v1400 = vlaneseq
    %v1401 = vshrl.u32 %v1400, 7
    %v1402 = vsub.s32 %v1399, %v1401
    %v1403 = vrot.slane %v1386, %v1402
    %v1404 = vcombine.high %v1403, %v1403
    %v1406 = vunpack.c.l.s4 1966171168
    %v1407 = vunpack.c.0.s8 %v1406
    %v1408 = vlaneseq
    %v1409 = vshrl.u32 %v1408, 7
    %v1410 = vsub.s32 %v1407, %v1409
    %v1411 = vrot.slane %v1403, %v1410
    %v1413 = vunpack.c.l.s4 1966171168
    %v1414 = vunpack.c.0.s8 %v1413
    %v1415 = vlaneseq
    %v1416 = vshrl.u32 %v1415, 7
    %v1417 = vsub.s32 %v1414, %v1416
    %v1418 = vrot.slane %v1404, %v1417
    %v1419 = vlaneseq
    %v1420 = vshrl.u32 %v1419, 7
    %v1421 = vsub.s32 0, %v1420
    %v1422 = vrot.slane %v1411, %v1421
    %v1423 = vlaneseq
    %v1424 = vshrl.u32 %v1423, 7
    %v1425 = vsub.s32 0, %v1424
    %v1426 = vrot.slane %v1418, %v1425
    %v1429 = vmul.f32 %v1422, %v1394
    %v1430 = vmul.f32 %v1422, %v1395
    %v1431 = vmul.f32 %v1426, %v1394
    %v1432 = vmul.f32 %v1426, %v1395
    %v1433 = vmul.f32 %v1429, 1.442695
    %v1434 = vpow.pop %v1433
    %v1435 = vmul.f32 %v1430, 1.442695
    %v1436 = vpow.pop %v1435
    %v1437 = vmul.f32 %v1431, 1.442695
    %v1438 = vpow.pop %v1437
    %v1439 = vmul.f32 %v1432, 1.442695
    %v1440 = vpow.pop %v1439
    %v1441 = vlaneseq
    %v1442 = vshrl.u32 %v1441, 7
    %v1443 = vsub.s32 0, %v1442
    %v1444 = vrot.slane %v1244, %v1443
    %1446 = vbcast.lane.b32.xlu0 %v1444, 256
    %v1447 = vpop.permute.xlu0 %1446
    %s1449 = sor.u32 256, 8
    %1450 = vbcast.lane.b32.xlu0 %v1444, %s1449
    %v1451 = vpop.permute.xlu0 %1450
    %v1452 = vlaneseq
    %v1453 = vshrl.u32 %v1452, 7
    %v1454 = vsub.s32 1, %v1453
    %v1455 = vrot.slane %v1244, %v1454
    %1457 = vbcast.lane.b32.xlu0 %v1455, 256
    %v1458 = vpop.permute.xlu0 %1457
    %s1460 = sor.u32 256, 8
    %1461 = vbcast.lane.b32.xlu0 %v1455, %s1460
    %v1462 = vpop.permute.xlu0 %1461
    %v1463 = vmul.f32 %v1422, %v1447
    %v1464 = vmul.f32 %v1422, %v1451
    %v1465 = vmul.f32 %v1426, %v1458
    %v1466 = vmul.f32 %v1426, %v1462
    %v1469 = vunpack.c.l.s4 1966171168
    %v1470 = vunpack.c.0.s8 %v1469
    %v1471 = vlaneseq
    %v1472 = vshrl.u32 %v1471, 7
    %v1473 = vsub.s32 %v1470, %v1472
    %v1474 = vrot.slane %v1066, %v1473
    %v1475 = vcombine.high %v1474, %v1474
    %v1477 = vunpack.c.l.s4 1966171168
    %v1478 = vunpack.c.0.s8 %v1477
    %v1479 = vlaneseq
    %v1480 = vshrl.u32 %v1479, 7
    %v1481 = vsub.s32 %v1478, %v1480
    %v1482 = vrot.slane %v1474, %v1481
    %v1484 = vunpack.c.l.s4 1966171168
    %v1485 = vunpack.c.0.s8 %v1484
    %v1486 = vlaneseq
    %v1487 = vshrl.u32 %v1486, 7
    %v1488 = vsub.s32 %v1485, %v1487
    %v1489 = vrot.slane %v1475, %v1488
    %v1490 = vlaneseq
    %v1491 = vshrl.u32 %v1490, 7
    %v1492 = vsub.s32 0, %v1491
    %v1493 = vrot.slane %v1482, %v1492
    %v1494 = vlaneseq
    %v1495 = vshrl.u32 %v1494, 7
    %v1496 = vsub.s32 0, %v1495
    %v1497 = vrot.slane %v1489, %v1496
    %v1500 = vmul.f32 %v1463, %v1493
    %v1501 = vmul.f32 %v1464, %v1493
    %v1502 = vmul.f32 %v1465, %v1497
    %v1503 = vmul.f32 %v1466, %v1497
    %s1504 = scalar_lea.vmem %s14, 32
    %v1505 = vld [vmem:[%s1504] sm:$0xff]
    %v1506 = vld [vmem:[%s1504 + $0x8] sm:$0xff]
    %v1507 = vld [vmem:[%s1504 + $0x10] sm:$0xff]
    %v1508 = vld [vmem:[%s1504 + $0x18] sm:$0xff]
    %v1509 = vmul.f32 %v1505, %v1434
    %v1510 = vmul.f32 %v1506, %v1436
    %v1511 = vmul.f32 %v1507, %v1438
    %v1512 = vmul.f32 %v1508, %v1440
    %v1513 = vadd.f32 %v1509, %v1500
    %v1514 = vadd.f32 %v1510, %v1501
    %v1515 = vadd.f32 %v1511, %v1502
    %v1516 = vadd.f32 %v1512, %v1503
    %s1517 = scalar_lea.vmem %s20, 32
    %1518 = vst.msk [vmem:[%s1517] sm:$0xff] %vm328, %v1513
    %1519 = vst.msk [vmem:[%s1517 + $0x8] sm:$0xff] %vm328, %v1514
    %1520 = vst.msk [vmem:[%s1517 + $0x10] sm:$0xff] %vm328, %v1515
    %1521 = vst.msk [vmem:[%s1517 + $0x18] sm:$0xff] %vm328, %v1516
    %v1522 = vlaneseq
    %v1523 = vshrl.u32 %v1522, 7
    %v1524 = vsub.s32 0, %v1523
    %v1525 = vrot.slane %v1317, %v1524
    %1527 = vbcast.lane.b32.xlu0 %v1525, 256
    %v1528 = vpop.permute.xlu0 %1527
    %s1530 = sor.u32 256, 8
    %1531 = vbcast.lane.b32.xlu0 %v1525, %s1530
    %v1532 = vpop.permute.xlu0 %1531
    %v1533 = vlaneseq
    %v1534 = vshrl.u32 %v1533, 7
    %v1535 = vsub.s32 1, %v1534
    %v1536 = vrot.slane %v1317, %v1535
    %1538 = vbcast.lane.b32.xlu0 %v1536, 256
    %v1539 = vpop.permute.xlu0 %1538
    %s1541 = sor.u32 256, 8
    %1542 = vbcast.lane.b32.xlu0 %v1536, %s1541
    %v1543 = vpop.permute.xlu0 %1542
    %v1544 = vmul.f32 %v1513, %v1528
    %v1545 = vmul.f32 %v1514, %v1532
    %v1546 = vmul.f32 %v1515, %v1539
    %v1547 = vmul.f32 %v1516, %v1543
    %v1548 = vsel %vm328, %v1544, 0.0
    %v1549 = vsel %vm328, %v1545, 0.0
    %v1550 = vadd.f32 %v1548, %v1549
    %v1551 = vrot.slane %v1550, 4
    %v1552 = vadd.f32 %v1550, %v1551
    %v1553 = vrot.slane %v1552, 2
    %v1554 = vadd.f32 %v1552, %v1553
    %v1555 = vrot.slane %v1554, 1
    %v1556 = vadd.f32 %v1554, %v1555
    %v1557 = vsel %vm328, %v1546, 0.0
    %v1558 = vsel %vm328, %v1547, 0.0
    %v1559 = vadd.f32 %v1557, %v1558
    %v1560 = vrot.slane %v1559, 4
    %v1561 = vadd.f32 %v1559, %v1560
    %v1562 = vrot.slane %v1561, 2
    %v1563 = vadd.f32 %v1561, %v1562
    %v1564 = vrot.slane %v1563, 1
    %v1565 = vadd.f32 %v1563, %v1564
    %s1566 = scalar_lea.vmem %s13, 1
    %v1567 = vld [vmem:[%s1566] sm:$0x1]
    %v1569 = vlaneseq
    %v1570 = vshrl.u32 %v1569, 7
    %v1571 = vsub.s32 0, %v1570
    %v1572 = vrot.slane %v1567, %v1571
    %v1574 = vmul.f32 %v1572, %v1066
    %v1576 = vrot.slane %v1574, 1
    %v1579 = vadd.f32 %v1556, %v1574
    %v1580 = vadd.f32 %v1565, %v1576
    %v1581 = vsub.f32 0.0, %v999
    %v1582 = vmul.f32 %v1581, 1.442695
    %v1583 = vpow.pop %v1582
    %v1584 = vadd.f32 %v1583, 1.0
    %v1585 = vrcp.pop %v1584
    %v1586 = vmul.f32 1.0, %v1585
    %v1587 = vmul.f32 %v999, %v1586
    %v1589 = vrot.slane %v1587, 1
    %v1592 = vmul.f32 %v1579, %v1587
    %v1593 = vmul.f32 %v1580, %v1589
    %v1594 = vpack.c.bf16 %v1592, %v1592
    %v1595 = vpack.c.bf16 %v1593, %v1593
    %s1596 = scalar_lea.vmem %s15, 32
    %v1597 = vld [vmem:[%s1596] sm:$0xf]
    %v1598 = vld [vmem:[%s1596 + $0x4] sm:$0xf]
    %v1599 = vld [vmem:[%s1596 + $0x8] sm:$0xf]
    %v1600 = vld [vmem:[%s1596 + $0xc] sm:$0xf]
    %v1601 = vld [vmem:[%s1596 + $0x10] sm:$0xf]
    %v1602 = vld [vmem:[%s1596 + $0x14] sm:$0xf]
    %v1603 = vld [vmem:[%s1596 + $0x18] sm:$0xf]
    %v1604 = vld [vmem:[%s1596 + $0x1c] sm:$0xf]
    %v1607 = vunpack.c.l.b16 %v1594
    %v1608 = vunpack.c.l.b16 %v1595
    %v1609 = vrot.slane %v1608, 7
    %v1610 = vsel %vm225, %v1609, %v1607
    %v1611 = vpack.c.b16 %v1610, %v1610
    %v1620 = vunpack.c.l.b16 %v1597
    %v1621 = vunpack.c.l.b16 %v1598
    %v1622 = vunpack.c.l.b16 %v1599
    %v1623 = vunpack.c.l.b16 %v1600
    %v1624 = vunpack.c.l.b16 %v1601
    %v1625 = vunpack.c.l.b16 %v1602
    %v1626 = vunpack.c.l.b16 %v1603
    %v1627 = vunpack.c.l.b16 %v1604
    %v1628 = vpack.c.b16 %v1621, %v1620
    %v1629 = vpack.c.b16 %v1623, %v1622
    %v1630 = vpack.c.b16 %v1625, %v1624
    %v1631 = vpack.c.b16 %v1627, %v1626
    %v1637 = vsel %vm328, %v1611, 0
    %1639 = vmatprep.subr.bf16.mxu0 0
    %1640 = vmatpush1.bf16.msra.mxu0 %v1628
    %1641 = vmatprep.subr.bf16.mxu0 0
    %1642 = vmatpush1.bf16.msra.mxu0 %v1629
    %1643 = vmatprep.subr.bf16.mxu0 0
    %1644 = vmatpush1.bf16.msra.mxu0 %v1630
    %1645 = vmatprep.subr.bf16.mxu0 0
    %1646 = vmatpush1.bf16.msra.mxu0 %v1631
    %1647 = vmatprep.subr.bf16.mxu0 0
    %1648 = vmatpush1.bf16.msra.mxu0 0
    %1649 = vmatprep.subr.bf16.mxu0 0
    %1650 = vmatpush1.bf16.msra.mxu0 0
    %1651 = vmatprep.subr.bf16.mxu0 0
    %1652 = vmatpush1.bf16.msra.mxu0 0
    %1653 = vmatprep.subr.bf16.mxu0 0
    %1654 = vmatpush1.bf16.msra.mxu0 0
    %1655 = vmatprep.subr.bf16.mxu0 0
    %1656 = vmatpush1.bf16.msra.mxu0 0
    %1657 = vmatprep.subr.bf16.mxu0 0
    %1658 = vmatpush1.bf16.msra.mxu0 0
    %1659 = vmatprep.subr.bf16.mxu0 0
    %1660 = vmatpush1.bf16.msra.mxu0 0
    %1661 = vmatprep.subr.bf16.mxu0 0
    %1662 = vmatpush1.bf16.msra.mxu0 0
    %1663 = vmatprep.subr.bf16.mxu0 0
    %1664 = vmatpush1.bf16.msra.mxu0 0
    %1665 = vmatprep.subr.bf16.mxu0 0
    %1666 = vmatpush1.bf16.msra.mxu0 0
    %1667 = vmatprep.subr.bf16.mxu0 0
    %1668 = vmatpush1.bf16.msra.mxu0 0
    %1669 = vmatprep.subr.bf16.mxu0 0
    %1670 = vmatpush1.bf16.msra.mxu0 0
    %1671 = vmatprep.mubr.bf16.mxu0 0
    %1672 = vmatmul.mubr.bf16.gmra.mrb[0].mxu0 %v1637
    %v1673 = vpop.f32.mrb[0].mxu0
    %v1674 = vadd.f32 0.0, %v1673
    %v1675 = vpop.f32.mrb[0].mxu0
    %v1676 = vpop.f32.mrb[0].mxu0
    %v1677 = vpop.f32.mrb[0].mxu0
    %1678 = vdwg.mxu0
    %v1679 = vadd.f32 %v868, %v1674
    %v1680 = vmul.f32 %v1679, %v1679
    %v1681 = vsel %vm66, %v1680, 0.0
    %1682 = vadd.xlane.f32.xlu0 %v1681
    %v1683 = vpop.xlane.xlu0 %1682
    %v1684 = vmul.f32 %v1683, %v70
    %v1685 = vadd.f32 %v1684, 1e-05
    %v1686 = vrsqrt.pop %v1685
    %v1687 = vmul.f32 %v1679, %v1686
    %v1688 = vld [vmem:[%s16] sm:$0x1]
    %v1690 = vlaneseq
    %v1691 = vshrl.u32 %v1690, 7
    %v1692 = vsub.s32 0, %v1691
    %v1693 = vrot.slane %v1688, %v1692
    %v1695 = vmul.f32 %v1687, %v1693
    %v1696 = vpack.c.bf16 %v1695, %v1695
    %v1697 = vld [vmem:[%s17] sm:$0xf]
    %v1698 = vld [vmem:[%s17 + $0x4] sm:$0xf]
    %v1699 = vld [vmem:[%s17 + $0x8] sm:$0xf]
    %v1700 = vld [vmem:[%s17 + $0xc] sm:$0xf]
    %v1705 = vunpack.c.l.b16 %v1697
    %v1706 = vunpack.c.l.b16 %v1698
    %v1707 = vunpack.c.l.b16 %v1699
    %v1708 = vunpack.c.l.b16 %v1700
    %v1709 = vpack.c.b16 %v1706, %v1705
    %v1710 = vpack.c.b16 %v1708, %v1707
    %v1714 = vsel %vm100, %v1696, 0
    %1716 = vmatprep.subr.bf16.mxu0 0
    %1717 = vmatpush1.bf16.msra.mxu0 %v1709
    %1718 = vmatprep.subr.bf16.mxu0 0
    %1719 = vmatpush1.bf16.msra.mxu0 %v1710
    %1720 = vmatprep.subr.bf16.mxu0 0
    %1721 = vmatpush1.bf16.msra.mxu0 0
    %1722 = vmatprep.subr.bf16.mxu0 0
    %1723 = vmatpush1.bf16.msra.mxu0 0
    %1724 = vmatprep.subr.bf16.mxu0 0
    %1725 = vmatpush1.bf16.msra.mxu0 0
    %1726 = vmatprep.subr.bf16.mxu0 0
    %1727 = vmatpush1.bf16.msra.mxu0 0
    %1728 = vmatprep.subr.bf16.mxu0 0
    %1729 = vmatpush1.bf16.msra.mxu0 0
    %1730 = vmatprep.subr.bf16.mxu0 0
    %1731 = vmatpush1.bf16.msra.mxu0 0
    %1732 = vmatprep.subr.bf16.mxu0 0
    %1733 = vmatpush1.bf16.msra.mxu0 0
    %1734 = vmatprep.subr.bf16.mxu0 0
    %1735 = vmatpush1.bf16.msra.mxu0 0
    %1736 = vmatprep.subr.bf16.mxu0 0
    %1737 = vmatpush1.bf16.msra.mxu0 0
    %1738 = vmatprep.subr.bf16.mxu0 0
    %1739 = vmatpush1.bf16.msra.mxu0 0
    %1740 = vmatprep.subr.bf16.mxu0 0
    %1741 = vmatpush1.bf16.msra.mxu0 0
    %1742 = vmatprep.subr.bf16.mxu0 0
    %1743 = vmatpush1.bf16.msra.mxu0 0
    %1744 = vmatprep.subr.bf16.mxu0 0
    %1745 = vmatpush1.bf16.msra.mxu0 0
    %1746 = vmatprep.subr.bf16.mxu0 0
    %1747 = vmatpush1.bf16.msra.mxu0 0
    %1748 = vmatprep.mubr.bf16.mxu0 0
    %1749 = vmatmul.mubr.bf16.gmra.mrb[0].mxu0 %v1714
    %v1750 = vpop.f32.mrb[0].mxu0
    %v1751 = vadd.f32 0.0, %v1750
    %v1752 = vpop.f32.mrb[0].mxu0
    %v1753 = vpop.f32.mrb[0].mxu0
    %v1754 = vpop.f32.mrb[0].mxu0
    %1755 = vdwg.mxu0
    %1756 = vst [vmem:[#allocation2] sm:$0x3] %v1751
    // Predicated region
    $region74: #{mamba_tt_forward.1} parent=1 // pred_check
      _
    $region75: #{mamba_tt_forward.1} parent=1 // pred_check_branch
      %1758 = sbr.rel (0) target = $region77
    $region76: #{mamba_tt_forward.1} parent=1 // pred_region
      %s1760 = ssub.s32 32, 32
      %1761 = vsyncadd [#allocation3], %s1760
      %s1763 = sshll.u32 [#allocation2], 4
      %s1764 = int_to_ptr.vmem [resolvable:$true] %s1763
      %1766 = dma.vmem_to_hbm [thread:$0]  %s1764, 32, %s18, [#allocation3]
    $region77: #{mamba_tt_forward.1} parent=1 // pred_fallthru
      _
    // Predicated region
    $region78: #{mamba_tt_forward.1} parent=1 // pred_check
      _
    $region79: #{mamba_tt_forward.1} parent=1 // pred_check_branch
      %1768 = sbr.rel (0) target = $region81
    $region80: #{mamba_tt_forward.1} parent=1 // pred_region
      _
    $region81: #{mamba_tt_forward.1} parent=1 // pred_fallthru
      _
    // Predicated region
    $region82: #{mamba_tt_forward.1} parent=1 // pred_check
      _
    $region83: #{mamba_tt_forward.1} parent=1 // pred_check_branch
      %1770 = sbr.rel (0) target = $region85
    $region84: #{mamba_tt_forward.1} parent=1 // pred_region
      _
    $region85: #{mamba_tt_forward.1} parent=1 // pred_fallthru
      _
    // Predicated region
    $region86: #{mamba_tt_forward.1} parent=1 // pred_check
      _
    $region87: #{mamba_tt_forward.1} parent=1 // pred_check_branch
      %1772 = sbr.rel (0) target = $region89
    $region88: #{mamba_tt_forward.1} parent=1 // pred_region
      %1773 = dma.done [#allocation3], 32
    $region89: #{mamba_tt_forward.1} parent=1 // pred_fallthru
      _
    // Predicated region
    $region90: #{mamba_tt_forward.1} parent=1 // pred_check
      _
    $region91: #{mamba_tt_forward.1} parent=1 // pred_check_branch
      %1775 = sbr.rel (0) target = $region93
    $region92: #{mamba_tt_forward.1} parent=1 // pred_region
      _
    $region93: #{mamba_tt_forward.1} parent=1 // pred_fallthru
      _
    // Predicated region
    $region94: #{mamba_tt_forward.1} parent=1 // pred_check
      _
    $region95: #{mamba_tt_forward.1} parent=1 // pred_check_branch
      %1777 = sbr.rel (0) target = $region97
    $region96: #{mamba_tt_forward.1} parent=1 // pred_region
      _
    $region97: #{mamba_tt_forward.1} parent=1 // pred_fallthru
      _
    %1778 = vsyncpa [#allocation3], 1

</llo_original>
